<compile_context>
chip_gen: v7x
topology: tpu7x:2x2x1
jax: 0.10.0
libtpu: 0.0.40
codegen_flags: <defaults>
</compile_context>

<pallas_src>
import functools

import numpy as np

import jax
import jax.numpy as jnp
from jax.experimental import pallas as pl
from jax.experimental.pallas import tpu as pltpu


_SB = 256   # padded score block per d (real width T*H*H = 192)
_EB = 128   # padded value/output block per j (real width T*C = 96)


# ------------------------------------------------------- host-side folding --

def _fold_qkv_weights(w_qkv, b_qkv, T, H, D, scale):
    """Fold the (t,i,d)/(t,j,d) gathers, the qk scale and the h-broadcast of v
    into the qkv weight, with 128-lane-aligned padded layouts.

    Score layout  : col = d*_SB + (t*H + i)*H + j     (pad cols zeroed)
    Value layout  : col = j*_EB + t*C + h*D + d       (pad cols zeroed)
    """
    C = H * D
    w = np.asarray(w_qkv, np.float32)        # (C, 3C), acts as x @ w
    b = np.asarray(b_qkv, np.float32)        # (3C,)

    wq = np.zeros((C, D * _SB), np.float32); bq = np.zeros((D * _SB,), np.float32)
    wk = np.zeros((C, D * _SB), np.float32); bk = np.zeros((D * _SB,), np.float32)
    for d in range(D):
        for t in range(T):
            for i in range(H):
                for j in range(H):
                    col = d * _SB + (t * H + i) * H + j
                    wq[:, col] = w[:, t * C + i * D + d] * scale
                    bq[col] = b[t * C + i * D + d] * scale
                    wk[:, col] = w[:, t * C + j * D + d]
                    bk[col] = b[t * C + j * D + d]

    wv = np.zeros((C, H * _EB), np.float32); bv = np.zeros((H * _EB,), np.float32)
    for j in range(H):
        for t in range(T):
            for h in range(H):
                for d in range(D):
                    col = j * _EB + t * C + h * D + d
                    wv[:, col] = w[:, t * C + j * D + d]
                    bv[col] = b[t * C + j * D + d]

    return (jnp.asarray(wq), jnp.asarray(bq)[None, :],
            jnp.asarray(wk), jnp.asarray(bk)[None, :],
            jnp.asarray(wv), jnp.asarray(bv)[None, :])


def _fold_output_projection(w_proj, b_proj, T, H, D):
    """Fold (N,3,H,D) -> transpose(1,2) -> reshape(B,N,C) -> proj into one
    (_EB, 3C) matmul on the (padded) attention output."""
    C = H * D
    F = T * C
    wp = np.asarray(w_proj, np.float32)
    w_bd = np.kron(np.eye(T, dtype=np.float32), wp)          # (F, F) block-diag proj
    dst = np.empty((F,), np.int32)
    for t in range(T):
        for h in range(H):
            for d in range(D):
                dst[t * C + h * D + d] = h * (T * D) + t * D + d   # (t,h,d)->(h,t,d)
    w_tail = np.zeros((_EB, F), np.float32)
    w_tail[:F, :] = w_bd[dst, :]             # fold the column permutation in
    b_tail = np.tile(np.asarray(b_proj, np.float32), T)       # (F,)
    return jnp.asarray(w_tail), jnp.asarray(b_tail)[None, :]


# ------------------------------------------------------------------ kernel --

def _tree_sum(blocks):
    while len(blocks) > 1:
        blocks = [blocks[i] + blocks[i + 1] for i in range(0, len(blocks), 2)]
    return blocks[0]


def _fused_attention_kernel(x_ref, wq_ref, bq_ref, wk_ref, bk_ref,
                            wv_ref, bv_ref, wt_ref, bt_ref, y_ref,
                            *, n_tok, num_heads, n_three, head_dim):
    f32 = jnp.float32
    N, H, T, D = n_tok, num_heads, n_three, head_dim
    C = H * D
    S = T * H * H
    sh_h = H.bit_length() - 1       # log2(H)
    sh_d = D.bit_length() - 1       # log2(D)
    sh_eb = _EB.bit_length() - 1    # log2(_EB)

    x0 = x_ref[0 * N:1 * N, :]      # q source (quirky is_mask==0: batch row 0)
    x1 = x_ref[1 * N:2 * N, :]      # k source (batch row 1)
    x2 = x_ref[2 * N:3 * N, :]      # v source (batch row 2)

    # (1) scores via folded wide matmuls + aligned d-block reduction:
    #     s[n, (t*H+i)*H + j] = scale * sum_d q[n,(t,i,d)] * k[n,(t,j,d)]
    qe = jnp.dot(x0, wq_ref[...], preferred_element_type=f32) + bq_ref[...]
    ke = jnp.dot(x1, wk_ref[...], preferred_element_type=f32) + bk_ref[...]
    prod = qe * ke                                                   # (N, D*_SB)
    s = _tree_sum([prod[:, d * _SB:(d + 1) * _SB] for d in range(D)])[:, :S]

    # (2) softmax numerator.  The row max is a valid stabilizer for every
    #     8-wide segment (softmax is shift-invariant per segment).
    # TODO(synk): use a true per-segment max if inputs can be ill-conditioned.
    e = jnp.exp(s - jnp.max(s, axis=-1, keepdims=True))              # (N, S)

    # (3) gather e into the (j | t,h,d) output layout with an in-kernel one-hot
    #     built from iota compares (no HBM constant):
    #     fp[r, j*_EB + t*C + h*D + d] = 1  iff  r == (t*H + h)*H + j.
    #     Pad columns (e >= 96) never match because e>>2 >= 24 > max(r>>3).
    rr = jax.lax.broadcasted_iota(jnp.int32, (S, H * _EB), 0)
    cc = jax.lax.broadcasted_iota(jnp.int32, (S, H * _EB), 1)
    cond = ((rr >> sh_h) == ((cc & (_EB - 1)) >> sh_d)) & ((rr & (H - 1)) == (cc >> sh_eb))
    fp = jnp.where(cond, jnp.float32(1.0), jnp.float32(0.0))
    ef = jnp.dot(e, fp, preferred_element_type=f32)                  # (N, H*_EB)

    # (4) attn @ v and the softmax denominator out of one aligned j reduction:
    #     num[n,(t,h,d)] = sum_j e[n,(t,h,j)] * v[n,(t,j,d)]
    #     den[n,(t,h,d)] = sum_j e[n,(t,h,j)]
    vf = jnp.dot(x2, wv_ref[...], preferred_element_type=f32) + bv_ref[...]
    e_blk = [ef[:, j * _EB:(j + 1) * _EB] for j in range(H)]
    v_blk = [vf[:, j * _EB:(j + 1) * _EB] for j in range(H)]
    num = _tree_sum([e_blk[j] * v_blk[j] for j in range(H)])         # (N, _EB)
    den = _tree_sum(e_blk)                                           # (N, _EB)
    # Pad lanes (col >= T*C) have num = den = 0; keep den > 0 to avoid 0*inf.
    pad = jax.lax.broadcasted_iota(jnp.int32, (N, _EB), 1) >= T * C
    den = den + jnp.where(pad, jnp.float32(1.0), jnp.float32(0.0))
    o = num * pl.reciprocal(den, approx=True)                        # (N, _EB)

    # (5) transpose(1,2) + reshape(B,N,C) + output proj, folded into one matmul.
    y = jnp.dot(o, wt_ref[...], preferred_element_type=f32) + bt_ref[...]
    y_ref[...] = y.astype(y_ref.dtype)


# ----------------------------------------------------------------- forward --

def attention_forward(x, w_qkv, b_qkv, w_proj, b_proj, num_heads):
    """Pallas-backed forward, matching Attention.forward with is_mask=0."""
    B, N, C = x.shape
    assert B == 3, "is_mask==0 branch: q/k/v index the batch axis, so B must be 3"
    H = num_heads
    assert C % H == 0
    D = C // H
    T = 3                       # the '3' of reshape(B, N, 3, H, D)
    F = T * C
    assert (H & (H - 1)) == 0 and (D & (D - 1)) == 0, "H, D must be powers of two"
    assert T * H * H <= _SB and T * C <= _EB
    scale = D ** (-0.5)

    wq, bq, wk, bk, wv, bv = _fold_qkv_weights(w_qkv, b_qkv, T, H, D, scale)
    w_tail, b_tail = _fold_output_projection(w_proj, b_proj, T, H, D)

    x2d = x.reshape(B * N, C)
    kern = functools.partial(_fused_attention_kernel,
                             n_tok=N, num_heads=H, n_three=T, head_dim=D)

    y2d = pl.pallas_call(
        kern,
        out_shape=jax.ShapeDtypeStruct((N, F), x.dtype),
        grid=(1,),
        in_specs=[
            pl.BlockSpec((B * N, C), lambda i: (0, 0)),      # x (all 3 batch rows)
            pl.BlockSpec((C, 4 * _SB), lambda i: (0, 0)),    # wq (scale folded in)
            pl.BlockSpec((1, 4 * _SB), lambda i: (0, 0)),    # bq
            pl.BlockSpec((C, 4 * _SB), lambda i: (0, 0)),    # wk
            pl.BlockSpec((1, 4 * _SB), lambda i: (0, 0)),    # bk
            pl.BlockSpec((C, H * _EB), lambda i: (0, 0)),    # wv (h-broadcast folded)
            pl.BlockSpec((1, H * _EB), lambda i: (0, 0)),    # bv
            pl.BlockSpec((_EB, F), lambda i: (0, 0)),        # w_tail (perm+proj folded)
            pl.BlockSpec((1, F), lambda i: (0, 0)),          # b_tail
        ],
        out_specs=pl.BlockSpec((N, F), lambda i: (0, 0)),
        compiler_params=pltpu.CompilerParams(
            dimension_semantics=("arbitrary",)),
    )(x2d, wq, bq, wk, bk, wv, bv, w_tail, b_tail)

    # The (N, 3C) rows are already in the module's output order; this reshape
    # is a free, contiguous metadata change.
    return y2d.reshape(B, N, C)


def attention_ref(x, w_qkv, b_qkv, w_proj, b_proj, num_heads):
    """Pure-JAX reference of the same (quirky) PyTorch semantics."""
    B, N, C = x.shape
    H = num_heads
    D = C // H
    scale = D ** (-0.5)
    qkv = (x.reshape(B * N, C) @ w_qkv + b_qkv).reshape(B, N, 3, H, D)
    q, k, v = qkv[0], qkv[1], qkv[2]                       # (N, 3, H, D)
    attn = jnp.einsum('abhd,abed->abhe', q, k) * scale     # (N, 3, H, H)
    attn = jax.nn.softmax(attn, axis=-1)
    o = jnp.einsum('abhe,abed->abhd', attn, v)             # (N, 3, H, D)
    o = o.transpose(0, 2, 1, 3).reshape(B, N, C)
    return (o.reshape(B * N, C) @ w_proj + b_proj).reshape(B, N, C)


# --------------------------------------------------------------------- main --

if __name__ == "__main__":
    key = jax.random.PRNGKey(0)
    # B must be 3 for the is_mask==0 branch (see semantics note above).
    B, N, C, H = 3, 16, 32, 8
    k1, k2, k3, k4 = jax.random.split(key, 4)

    x = jax.random.normal(k1, (B, N, C), jnp.float32)
    # qkv: nn.Linear(dim, 3*dim, bias=False) -> weight (C, 3C) pre-transposed
    w_qkv = jax.random.normal(k2, (C, 3 * C), jnp.float32) * 0.05
    b_qkv = jnp.zeros((3 * C,), jnp.float32)               # qkv_bias=False
    # proj: nn.Linear(dim, dim) -> weight (C, C) pre-transposed + bias
    w_proj = jax.random.normal(k3, (C, C), jnp.float32) * 0.05
    b_proj = jax.random.normal(k4, (C,), jnp.float32) * 0.05

    y = attention_forward(x, w_qkv, b_qkv, w_proj, b_proj, H)
    jax.block_until_ready(y)

    y_ref = attention_ref(x, w_qkv, b_qkv, w_proj, b_proj, H)
    assert y.shape == (B, N, C)
    # approx (EUP) reciprocal in the softmax denominator -> few-1e-3 tolerance;
    # real layout/permutation bugs would show up as O(0.1) errors.
    np.testing.assert_allclose(np.asarray(y), np.asarray(y_ref),
                               rtol=5e-3, atol=5e-3)
    print("KERNEL_OK")
</pallas_src>

<mosaic_0001>
module attributes {stable_mosaic.version = 11 : i64} {
  func.func @_fused_attention_kernel(%arg0: i32, %arg1: memref<48x32xf32, #tpu.memory_space<vmem>>, %arg2: memref<32x1024xf32, #tpu.memory_space<vmem>>, %arg3: memref<1x1024xf32, #tpu.memory_space<vmem>>, %arg4: memref<32x1024xf32, #tpu.memory_space<vmem>>, %arg5: memref<1x1024xf32, #tpu.memory_space<vmem>>, %arg6: memref<32x1024xf32, #tpu.memory_space<vmem>>, %arg7: memref<1x1024xf32, #tpu.memory_space<vmem>>, %arg8: memref<128x96xf32, #tpu.memory_space<vmem>>, %arg9: memref<1x96xf32, #tpu.memory_space<vmem>>, %arg10: memref<16x96xf32, #tpu.memory_space<vmem>>) attributes {dimension_semantics = [#tpu.dimension_semantics<arbitrary>], iteration_bounds = array<i64: 1>, scalar_prefetch = 0 : i64, scratch_operands = 0 : i64, tpu.core_type = #tpu.core_type<tc>, window_params = [{pipeline_mode = #tpu.pipeline_mode<synchronous>, transform_indices = @transform_0, window_bounds = array<i64: 48, 32>}, {pipeline_mode = #tpu.pipeline_mode<synchronous>, transform_indices = @transform_1, window_bounds = array<i64: 32, 1024>}, {pipeline_mode = #tpu.pipeline_mode<synchronous>, transform_indices = @transform_2, window_bounds = array<i64: 1, 1024>}, {pipeline_mode = #tpu.pipeline_mode<synchronous>, transform_indices = @transform_3, window_bounds = array<i64: 32, 1024>}, {pipeline_mode = #tpu.pipeline_mode<synchronous>, transform_indices = @transform_4, window_bounds = array<i64: 1, 1024>}, {pipeline_mode = #tpu.pipeline_mode<synchronous>, transform_indices = @transform_5, window_bounds = array<i64: 32, 1024>}, {pipeline_mode = #tpu.pipeline_mode<synchronous>, transform_indices = @transform_6, window_bounds = array<i64: 1, 1024>}, {pipeline_mode = #tpu.pipeline_mode<synchronous>, transform_indices = @transform_7, window_bounds = array<i64: 128, 96>}, {pipeline_mode = #tpu.pipeline_mode<synchronous>, transform_indices = @transform_8, window_bounds = array<i64: 1, 96>}, {pipeline_mode = #tpu.pipeline_mode<synchronous>, transform_indices = @transform_9, window_bounds = array<i64: 16, 96>}]} {
    %c0 = arith.constant 0 : index
    %c0_0 = arith.constant 0 : index
    %0 = vector.load %arg1[%c0, %c0_0] : memref<48x32xf32, #tpu.memory_space<vmem>>, vector<16x32xf32>
    %c16 = arith.constant 16 : index
    %c0_1 = arith.constant 0 : index
    %1 = vector.load %arg1[%c16, %c0_1] : memref<48x32xf32, #tpu.memory_space<vmem>>, vector<16x32xf32>
    %c32 = arith.constant 32 : index
    %c0_2 = arith.constant 0 : index
    %2 = vector.load %arg1[%c32, %c0_2] : memref<48x32xf32, #tpu.memory_space<vmem>>, vector<16x32xf32>
    %c0_3 = arith.constant 0 : index
    %c0_4 = arith.constant 0 : index
    %3 = vector.load %arg2[%c0_3, %c0_4] : memref<32x1024xf32, #tpu.memory_space<vmem>>, vector<32x1024xf32>
    %cst = arith.constant dense<0.000000e+00> : vector<16x1024xf32>
    %4 = tpu.matmul %0, %3, %cst {dimension_numbers = #tpu.dot_dimension_numbers<[1], [0], [0], [1], [0, 0, 1, 1], [], []>} : vector<16x32xf32>, vector<32x1024xf32>, vector<16x1024xf32> -> vector<16x1024xf32>
    %c0_5 = arith.constant 0 : index
    %c0_6 = arith.constant 0 : index
    %5 = vector.load %arg3[%c0_5, %c0_6] : memref<1x1024xf32, #tpu.memory_space<vmem>>, vector<1x1024xf32>
    %6 = vector.broadcast %5 : vector<1x1024xf32> to vector<16x1024xf32>
    %7 = arith.addf %4, %6 : vector<16x1024xf32>
    %c0_7 = arith.constant 0 : index
    %c0_8 = arith.constant 0 : index
    %8 = vector.load %arg4[%c0_7, %c0_8] : memref<32x1024xf32, #tpu.memory_space<vmem>>, vector<32x1024xf32>
    %cst_9 = arith.constant dense<0.000000e+00> : vector<16x1024xf32>
    %9 = tpu.matmul %1, %8, %cst_9 {dimension_numbers = #tpu.dot_dimension_numbers<[1], [0], [0], [1], [0, 0, 1, 1], [], []>} : vector<16x32xf32>, vector<32x1024xf32>, vector<16x1024xf32> -> vector<16x1024xf32>
    %c0_10 = arith.constant 0 : index
    %c0_11 = arith.constant 0 : index
    %10 = vector.load %arg5[%c0_10, %c0_11] : memref<1x1024xf32, #tpu.memory_space<vmem>>, vector<1x1024xf32>
    %11 = vector.broadcast %10 : vector<1x1024xf32> to vector<16x1024xf32>
    %12 = arith.addf %9, %11 : vector<16x1024xf32>
    %13 = arith.mulf %7, %12 : vector<16x1024xf32>
    %14 = vector.extract_strided_slice %13 {offsets = [0, 0], sizes = [16, 256], strides = [1, 1]} : vector<16x1024xf32> to vector<16x256xf32>
    %15 = vector.extract_strided_slice %13 {offsets = [0, 256], sizes = [16, 256], strides = [1, 1]} : vector<16x1024xf32> to vector<16x256xf32>
    %16 = vector.extract_strided_slice %13 {offsets = [0, 512], sizes = [16, 256], strides = [1, 1]} : vector<16x1024xf32> to vector<16x256xf32>
    %17 = vector.extract_strided_slice %13 {offsets = [0, 768], sizes = [16, 256], strides = [1, 1]} : vector<16x1024xf32> to vector<16x256xf32>
    %18 = arith.addf %14, %15 : vector<16x256xf32>
    %19 = arith.addf %16, %17 : vector<16x256xf32>
    %20 = arith.addf %18, %19 : vector<16x256xf32>
    %21 = vector.extract_strided_slice %20 {offsets = [0, 0], sizes = [16, 192], strides = [1, 1]} : vector<16x256xf32> to vector<16x192xf32>
    %cst_12 = arith.constant dense<0xFF800000> : vector<16xf32>
    %22 = vector.multi_reduction <maximumf>, %21, %cst_12 [1] : vector<16x192xf32> to vector<16xf32>
    %23 = vector.shape_cast %22 : vector<16xf32> to vector<16x1xf32>
    %24 = vector.broadcast %23 : vector<16x1xf32> to vector<16x192xf32>
    %25 = arith.subf %21, %24 : vector<16x192xf32>
    %26 = math.exp %25 : vector<16x192xf32>
    %27 = tpu.iota {dimensions = array<i32: 0>} : vector<192x1024xi32>
    %28 = tpu.iota {dimensions = array<i32: 1>} : vector<192x1024xi32>
    %c3_i32 = arith.constant 3 : i32
    %29 = vector.broadcast %c3_i32 : i32 to vector<192x1024xi32>
    %30 = arith.shrsi %27, %29 : vector<192x1024xi32>
    %c127_i32 = arith.constant 127 : i32
    %31 = vector.broadcast %c127_i32 : i32 to vector<192x1024xi32>
    %32 = arith.andi %28, %31 : vector<192x1024xi32>
    %c2_i32 = arith.constant 2 : i32
    %33 = vector.broadcast %c2_i32 : i32 to vector<192x1024xi32>
    %34 = arith.shrsi %32, %33 : vector<192x1024xi32>
    %35 = arith.cmpi eq, %30, %34 : vector<192x1024xi32>
    %c7_i32 = arith.constant 7 : i32
    %36 = vector.broadcast %c7_i32 : i32 to vector<192x1024xi32>
    %37 = arith.andi %27, %36 : vector<192x1024xi32>
    %c7_i32_13 = arith.constant 7 : i32
    %38 = vector.broadcast %c7_i32_13 : i32 to vector<192x1024xi32>
    %39 = arith.shrsi %28, %38 : vector<192x1024xi32>
    %40 = arith.cmpi eq, %37, %39 : vector<192x1024xi32>
    %41 = arith.andi %35, %40 : vector<192x1024xi1>
    %cst_14 = arith.constant 1.000000e+00 : f32
    %cst_15 = arith.constant 0.000000e+00 : f32
    %42 = vector.broadcast %cst_14 : f32 to vector<192x1024xf32>
    %43 = vector.broadcast %cst_15 : f32 to vector<192x1024xf32>
    %44 = arith.select %41, %42, %43 : vector<192x1024xi1>, vector<192x1024xf32>
    %cst_16 = arith.constant dense<0.000000e+00> : vector<16x1024xf32>
    %45 = tpu.matmul %26, %44, %cst_16 {dimension_numbers = #tpu.dot_dimension_numbers<[1], [0], [0], [1], [0, 0, 1, 1], [], []>} : vector<16x192xf32>, vector<192x1024xf32>, vector<16x1024xf32> -> vector<16x1024xf32>
    %c0_17 = arith.constant 0 : index
    %c0_18 = arith.constant 0 : index
    %46 = vector.load %arg6[%c0_17, %c0_18] : memref<32x1024xf32, #tpu.memory_space<vmem>>, vector<32x1024xf32>
    %cst_19 = arith.constant dense<0.000000e+00> : vector<16x1024xf32>
    %47 = tpu.matmul %2, %46, %cst_19 {dimension_numbers = #tpu.dot_dimension_numbers<[1], [0], [0], [1], [0, 0, 1, 1], [], []>} : vector<16x32xf32>, vector<32x1024xf32>, vector<16x1024xf32> -> vector<16x1024xf32>
    %c0_20 = arith.constant 0 : index
    %c0_21 = arith.constant 0 : index
    %48 = vector.load %arg7[%c0_20, %c0_21] : memref<1x1024xf32, #tpu.memory_space<vmem>>, vector<1x1024xf32>
    %49 = vector.broadcast %48 : vector<1x1024xf32> to vector<16x1024xf32>
    %50 = arith.addf %47, %49 : vector<16x1024xf32>
    %51 = vector.extract_strided_slice %45 {offsets = [0, 0], sizes = [16, 128], strides = [1, 1]} : vector<16x1024xf32> to vector<16x128xf32>
    %52 = vector.extract_strided_slice %45 {offsets = [0, 128], sizes = [16, 128], strides = [1, 1]} : vector<16x1024xf32> to vector<16x128xf32>
    %53 = vector.extract_strided_slice %45 {offsets = [0, 256], sizes = [16, 128], strides = [1, 1]} : vector<16x1024xf32> to vector<16x128xf32>
    %54 = vector.extract_strided_slice %45 {offsets = [0, 384], sizes = [16, 128], strides = [1, 1]} : vector<16x1024xf32> to vector<16x128xf32>
    %55 = vector.extract_strided_slice %45 {offsets = [0, 512], sizes = [16, 128], strides = [1, 1]} : vector<16x1024xf32> to vector<16x128xf32>
    %56 = vector.extract_strided_slice %45 {offsets = [0, 640], sizes = [16, 128], strides = [1, 1]} : vector<16x1024xf32> to vector<16x128xf32>
    %57 = vector.extract_strided_slice %45 {offsets = [0, 768], sizes = [16, 128], strides = [1, 1]} : vector<16x1024xf32> to vector<16x128xf32>
    %58 = vector.extract_strided_slice %45 {offsets = [0, 896], sizes = [16, 128], strides = [1, 1]} : vector<16x1024xf32> to vector<16x128xf32>
    %59 = vector.extract_strided_slice %50 {offsets = [0, 0], sizes = [16, 128], strides = [1, 1]} : vector<16x1024xf32> to vector<16x128xf32>
    %60 = vector.extract_strided_slice %50 {offsets = [0, 128], sizes = [16, 128], strides = [1, 1]} : vector<16x1024xf32> to vector<16x128xf32>
    %61 = vector.extract_strided_slice %50 {offsets = [0, 256], sizes = [16, 128], strides = [1, 1]} : vector<16x1024xf32> to vector<16x128xf32>
    %62 = vector.extract_strided_slice %50 {offsets = [0, 384], sizes = [16, 128], strides = [1, 1]} : vector<16x1024xf32> to vector<16x128xf32>
    %63 = vector.extract_strided_slice %50 {offsets = [0, 512], sizes = [16, 128], strides = [1, 1]} : vector<16x1024xf32> to vector<16x128xf32>
    %64 = vector.extract_strided_slice %50 {offsets = [0, 640], sizes = [16, 128], strides = [1, 1]} : vector<16x1024xf32> to vector<16x128xf32>
    %65 = vector.extract_strided_slice %50 {offsets = [0, 768], sizes = [16, 128], strides = [1, 1]} : vector<16x1024xf32> to vector<16x128xf32>
    %66 = vector.extract_strided_slice %50 {offsets = [0, 896], sizes = [16, 128], strides = [1, 1]} : vector<16x1024xf32> to vector<16x128xf32>
    %67 = arith.mulf %51, %59 : vector<16x128xf32>
    %68 = arith.mulf %52, %60 : vector<16x128xf32>
    %69 = arith.mulf %53, %61 : vector<16x128xf32>
    %70 = arith.mulf %54, %62 : vector<16x128xf32>
    %71 = arith.mulf %55, %63 : vector<16x128xf32>
    %72 = arith.mulf %56, %64 : vector<16x128xf32>
    %73 = arith.mulf %57, %65 : vector<16x128xf32>
    %74 = arith.mulf %58, %66 : vector<16x128xf32>
    %75 = arith.addf %67, %68 : vector<16x128xf32>
    %76 = arith.addf %69, %70 : vector<16x128xf32>
    %77 = arith.addf %71, %72 : vector<16x128xf32>
    %78 = arith.addf %73, %74 : vector<16x128xf32>
    %79 = arith.addf %75, %76 : vector<16x128xf32>
    %80 = arith.addf %77, %78 : vector<16x128xf32>
    %81 = arith.addf %79, %80 : vector<16x128xf32>
    %82 = arith.addf %51, %52 : vector<16x128xf32>
    %83 = arith.addf %53, %54 : vector<16x128xf32>
    %84 = arith.addf %55, %56 : vector<16x128xf32>
    %85 = arith.addf %57, %58 : vector<16x128xf32>
    %86 = arith.addf %82, %83 : vector<16x128xf32>
    %87 = arith.addf %84, %85 : vector<16x128xf32>
    %88 = arith.addf %86, %87 : vector<16x128xf32>
    %89 = tpu.iota {dimensions = array<i32: 1>} : vector<16x128xi32>
    %c96_i32 = arith.constant 96 : i32
    %90 = vector.broadcast %c96_i32 : i32 to vector<16x128xi32>
    %91 = arith.cmpi sge, %89, %90 : vector<16x128xi32>
    %cst_22 = arith.constant 1.000000e+00 : f32
    %cst_23 = arith.constant 0.000000e+00 : f32
    %92 = vector.broadcast %cst_22 : f32 to vector<16x128xf32>
    %93 = vector.broadcast %cst_23 : f32 to vector<16x128xf32>
    %94 = arith.select %91, %92, %93 : vector<16x128xi1>, vector<16x128xf32>
    %95 = arith.addf %88, %94 : vector<16x128xf32>
    %96 = tpu.reciprocal %95 {approx = true} : vector<16x128xf32> -> vector<16x128xf32>
    %97 = arith.mulf %81, %96 : vector<16x128xf32>
    %c0_24 = arith.constant 0 : index
    %c0_25 = arith.constant 0 : index
    %98 = vector.load %arg8[%c0_24, %c0_25] : memref<128x96xf32, #tpu.memory_space<vmem>>, vector<128x96xf32>
    %cst_26 = arith.constant dense<0.000000e+00> : vector<16x96xf32>
    %99 = tpu.matmul %97, %98, %cst_26 {dimension_numbers = #tpu.dot_dimension_numbers<[1], [0], [0], [1], [0, 0, 1, 1], [], []>} : vector<16x128xf32>, vector<128x96xf32>, vector<16x96xf32> -> vector<16x96xf32>
    %c0_27 = arith.constant 0 : index
    %c0_28 = arith.constant 0 : index
    %100 = vector.load %arg9[%c0_27, %c0_28] : memref<1x96xf32, #tpu.memory_space<vmem>>, vector<1x96xf32>
    %101 = vector.broadcast %100 : vector<1x96xf32> to vector<16x96xf32>
    %102 = arith.addf %99, %101 : vector<16x96xf32>
    %c0_29 = arith.constant 0 : index
    %c0_30 = arith.constant 0 : index
    %103 = vector.load %arg10[%c0_29, %c0_30] : memref<16x96xf32, #tpu.memory_space<vmem>>, vector<16x96xf32>
    tpu.vector_store %arg10[%c0_29, %c0_30], %102 {strides = array<i32>} : memref<16x96xf32, #tpu.memory_space<vmem>>, vector<16x96xf32>,
    return
  }
  func.func @transform_0(%arg0: i32) -> (i32, i32) {
    %c0_i32 = arith.constant 0 : i32
    %c0_i32_0 = arith.constant 0 : i32
    %c0_i32_1 = arith.constant 0 : i32
    return %c0_i32, %c0_i32_0 : i32, i32
  }
  func.func @transform_1(%arg0: i32) -> (i32, i32) {
    %c0_i32 = arith.constant 0 : i32
    %c0_i32_0 = arith.constant 0 : i32
    %c0_i32_1 = arith.constant 0 : i32
    return %c0_i32, %c0_i32_0 : i32, i32
  }
  func.func @transform_2(%arg0: i32) -> (i32, i32) {
    %c0_i32 = arith.constant 0 : i32
    %c0_i32_0 = arith.constant 0 : i32
    %c0_i32_1 = arith.constant 0 : i32
    return %c0_i32, %c0_i32_0 : i32, i32
  }
  func.func @transform_3(%arg0: i32) -> (i32, i32) {
    %c0_i32 = arith.constant 0 : i32
    %c0_i32_0 = arith.constant 0 : i32
    %c0_i32_1 = arith.constant 0 : i32
    return %c0_i32, %c0_i32_0 : i32, i32
  }
  func.func @transform_4(%arg0: i32) -> (i32, i32) {
    %c0_i32 = arith.constant 0 : i32
    %c0_i32_0 = arith.constant 0 : i32
    %c0_i32_1 = arith.constant 0 : i32
    return %c0_i32, %c0_i32_0 : i32, i32
  }
  func.func @transform_5(%arg0: i32) -> (i32, i32) {
    %c0_i32 = arith.constant 0 : i32
    %c0_i32_0 = arith.constant 0 : i32
    %c0_i32_1 = arith.constant 0 : i32
    return %c0_i32, %c0_i32_0 : i32, i32
  }
  func.func @transform_6(%arg0: i32) -> (i32, i32) {
    %c0_i32 = arith.constant 0 : i32
    %c0_i32_0 = arith.constant 0 : i32
    %c0_i32_1 = arith.constant 0 : i32
    return %c0_i32, %c0_i32_0 : i32, i32
  }
  func.func @transform_7(%arg0: i32) -> (i32, i32) {
    %c0_i32 = arith.constant 0 : i32
    %c0_i32_0 = arith.constant 0 : i32
    %c0_i32_1 = arith.constant 0 : i32
    return %c0_i32, %c0_i32_0 : i32, i32
  }
  func.func @transform_8(%arg0: i32) -> (i32, i32) {
    %c0_i32 = arith.constant 0 : i32
    %c0_i32_0 = arith.constant 0 : i32
    %c0_i32_1 = arith.constant 0 : i32
    return %c0_i32, %c0_i32_0 : i32, i32
  }
  func.func @transform_9(%arg0: i32) -> (i32, i32) {
    %c0_i32 = arith.constant 0 : i32
    %c0_i32_0 = arith.constant 0 : i32
    %c0_i32_1 = arith.constant 0 : i32
    return %c0_i32, %c0_i32_0 : i32, i32
  }
}

</mosaic_0001>

<llo_original>
// kernel: tpu_custom_call.1
$region0: #{tpu_custom_call.1}
  #allocation0 [shape = 'u32[]', space=smem, size = 0x4, offset = 0x4, fixed_abs, tag = 'smem constant byte address 0x4 - core index']
  #allocation1 [shape = 'u32[144,128]{1,0:T(1,128)}', space=vmem, size = 0x12000, scoped, tag = 'internal scratch']
  %s0 = inlined_call_operand.vmem [shape: f32[48,32], index: 0, kind: input, shape index: {}]
  %s1 = inlined_call_operand.vmem [shape: f32[32,1024], index: 1, kind: input, shape index: {}]
  %s2 = inlined_call_operand.vmem [shape: f32[1,1024], index: 2, kind: input, shape index: {}]
  %s3 = inlined_call_operand.hbm [shape: f32[32,1024], index: 3, kind: input, shape index: {}]
  %s4 = inlined_call_operand.vmem [shape: f32[1,1024], index: 4, kind: input, shape index: {}]
  %s5 = inlined_call_operand.hbm [shape: f32[32,1024], index: 5, kind: input, shape index: {}]
  %s6 = inlined_call_operand.vmem [shape: f32[1,1024], index: 6, kind: input, shape index: {}]
  %s7 = inlined_call_operand.vmem [shape: f32[128,96], index: 7, kind: input, shape index: {}]
  %s8 = inlined_call_operand.vmem [shape: f32[1,96], index: 8, kind: input, shape index: {}]
  %s9 = inlined_call_operand.hbm [shape: f32[16,96], index: 9, kind: output, shape index: {}]
  %s10 = sld [smem:[#allocation0]]
  $region54: #{tpu_custom_call.1} parent=0
    _
  %s12 = ssub.s32 1, %s10
  %s13 = scalar_select 0, %s12, %s10
  $region1: #{tpu_custom_call.1} parent=0
    #allocation2 [shape = 'u8[131072]{0}', space=vmem, size = 0x20000, scoped, tag = 'input window, operand 3, single buffered']
    #allocation3 [shape = 's32[1]{0}', space=sflag, size = 0x4, scoped, tag = 'scoped memory for tpu_custom_call.1']
    #allocation4 [shape = 's32[1]{0}', space=sflag, size = 0x4, scoped, tag = 'scoped memory for tpu_custom_call.1']
    #allocation5 [shape = 'u8[131072]{0}', space=vmem, size = 0x20000, scoped, tag = 'input window, operand 5, single buffered']
    #allocation6 [shape = 's32[1]{0}', space=sflag, size = 0x4, scoped, tag = 'scoped memory for tpu_custom_call.1']
    #allocation7 [shape = 'u8[8192]{0}', space=vmem, size = 0x2000, scoped, tag = 'output window, operand 0, single buffered']
    %14 = vsyncpa [#allocation3], 0
    %15 = vsyncpa [#allocation6], 0
    %16 = vsyncpa [#allocation4], 0
    // Predicated region
    $region2: #{tpu_custom_call.1} parent=1 // pred_check
      _
    $region3: #{tpu_custom_call.1} parent=1 // pred_check_branch
      %18 = sbr.rel (0) target = $region5
    $region4: #{tpu_custom_call.1} parent=1 // pred_region
      _
    $region5: #{tpu_custom_call.1} parent=1 // pred_fallthru
      _
    // Predicated region
    $region6: #{tpu_custom_call.1} parent=1 // pred_check
      _
    $region7: #{tpu_custom_call.1} parent=1 // pred_check_branch
      %20 = sbr.rel (0) target = $region9
    $region8: #{tpu_custom_call.1} parent=1 // pred_region
      _
    $region9: #{tpu_custom_call.1} parent=1 // pred_fallthru
      _
    // Predicated region
    $region10: #{tpu_custom_call.1} parent=1 // pred_check
      _
    $region11: #{tpu_custom_call.1} parent=1 // pred_check_branch
      %22 = sbr.rel (0) target = $region13
    $region12: #{tpu_custom_call.1} parent=1 // pred_region
      _
    $region13: #{tpu_custom_call.1} parent=1 // pred_fallthru
      _
    // Predicated region
    $region14: #{tpu_custom_call.1} parent=1 // pred_check
      _
    $region15: #{tpu_custom_call.1} parent=1 // pred_check_branch
      %24 = sbr.rel (0) target = $region17
    $region16: #{tpu_custom_call.1} parent=1 // pred_region
      %s26 = ssub.s32 4096, 4096
      %27 = vsyncadd [#allocation3], %s26
      %s28 = sshll.u32 [#allocation2], 4
      %s29 = int_to_ptr.vmem [resolvable:$true] %s28
      %34 = dma.hbm_to_vmem [thread:$0]  %s3, 4096, %s29, [#allocation3], 1024, 1024, 64
    $region17: #{tpu_custom_call.1} parent=1 // pred_fallthru
      _
    // Predicated region
    $region18: #{tpu_custom_call.1} parent=1 // pred_check
      _
    $region19: #{tpu_custom_call.1} parent=1 // pred_check_branch
      %36 = sbr.rel (0) target = $region21
    $region20: #{tpu_custom_call.1} parent=1 // pred_region
      _
    $region21: #{tpu_custom_call.1} parent=1 // pred_fallthru
      _
    // Predicated region
    $region22: #{tpu_custom_call.1} parent=1 // pred_check
      _
    $region23: #{tpu_custom_call.1} parent=1 // pred_check_branch
      %38 = sbr.rel (0) target = $region25
    $region24: #{tpu_custom_call.1} parent=1 // pred_region
      %s40 = ssub.s32 4096, 4096
      %41 = vsyncadd [#allocation6], %s40
      %s42 = sshll.u32 [#allocation5], 4
      %s43 = int_to_ptr.vmem [resolvable:$true] %s42
      %48 = dma.hbm_to_vmem [thread:$0]  %s5, 4096, %s43, [#allocation6], 1024, 1024, 64
    $region25: #{tpu_custom_call.1} parent=1 // pred_fallthru
      _
    // Predicated region
    $region26: #{tpu_custom_call.1} parent=1 // pred_check
      _
    $region27: #{tpu_custom_call.1} parent=1 // pred_check_branch
      %50 = sbr.rel (0) target = $region29
    $region28: #{tpu_custom_call.1} parent=1 // pred_region
      _
    $region29: #{tpu_custom_call.1} parent=1 // pred_fallthru
      _
    // Predicated region
    $region30: #{tpu_custom_call.1} parent=1 // pred_check
      _
    $region31: #{tpu_custom_call.1} parent=1 // pred_check_branch
      %52 = sbr.rel (0) target = $region33
    $region32: #{tpu_custom_call.1} parent=1 // pred_region
      _
    $region33: #{tpu_custom_call.1} parent=1 // pred_fallthru
      _
    // Predicated region
    $region34: #{tpu_custom_call.1} parent=1 // pred_check
      _
    $region35: #{tpu_custom_call.1} parent=1 // pred_check_branch
      %54 = sbr.rel (0) target = $region37
    $region36: #{tpu_custom_call.1} parent=1 // pred_region
      _
    $region37: #{tpu_custom_call.1} parent=1 // pred_fallthru
      _
    // Predicated region
    $region38: #{tpu_custom_call.1} parent=1 // pred_check
      _
    $region39: #{tpu_custom_call.1} parent=1 // pred_check_branch
      %56 = sbr.rel (0) target = $region41
    $region40: #{tpu_custom_call.1} parent=1 // pred_region
      %57 = dma.done [#allocation3], 4096
    $region41: #{tpu_custom_call.1} parent=1 // pred_fallthru
      _
    // Predicated region
    $region42: #{tpu_custom_call.1} parent=1 // pred_check
      _
    $region43: #{tpu_custom_call.1} parent=1 // pred_check_branch
      %59 = sbr.rel (0) target = $region45
    $region44: #{tpu_custom_call.1} parent=1 // pred_region
      %60 = dma.done [#allocation6], 4096
    $region45: #{tpu_custom_call.1} parent=1 // pred_fallthru
      _
    %v61 = vld [vmem:[%s0] sm:$0xff]
    %v62 = vld [vmem:[%s0 + $0x8] sm:$0xff]
    %v63 = vld [vmem:[%s0 + $0x10] sm:$0xff]
    %v64 = vld [vmem:[%s0 + $0x18] sm:$0xff]
    %v65 = vld [vmem:[%s0 + $0x20] sm:$0xff]
    %v66 = vld [vmem:[%s0 + $0x28] sm:$0xff]
    %v67 = vld [vmem:[%s1] sm:$0xff]
    %v68 = vld [vmem:[%s1 + $0x8] sm:$0xff]
    %v69 = vld [vmem:[%s1 + $0x10] sm:$0xff]
    %v70 = vld [vmem:[%s1 + $0x18] sm:$0xff]
    %v71 = vld [vmem:[%s1 + $0x20] sm:$0xff]
    %v72 = vld [vmem:[%s1 + $0x28] sm:$0xff]
    %v73 = vld [vmem:[%s1 + $0x30] sm:$0xff]
    %v74 = vld [vmem:[%s1 + $0x38] sm:$0xff]
    %v75 = vld [vmem:[%s1 + $0x40] sm:$0xff]
    %v76 = vld [vmem:[%s1 + $0x48] sm:$0xff]
    %v77 = vld [vmem:[%s1 + $0x50] sm:$0xff]
    %v78 = vld [vmem:[%s1 + $0x58] sm:$0xff]
    %v79 = vld [vmem:[%s1 + $0x60] sm:$0xff]
    %v80 = vld [vmem:[%s1 + $0x68] sm:$0xff]
    %v81 = vld [vmem:[%s1 + $0x70] sm:$0xff]
    %v82 = vld [vmem:[%s1 + $0x78] sm:$0xff]
    %v83 = vld [vmem:[%s1 + $0x80] sm:$0xff]
    %v84 = vld [vmem:[%s1 + $0x88] sm:$0xff]
    %v85 = vld [vmem:[%s1 + $0x90] sm:$0xff]
    %v86 = vld [vmem:[%s1 + $0x98] sm:$0xff]
    %v87 = vld [vmem:[%s1 + $0xa0] sm:$0xff]
    %v88 = vld [vmem:[%s1 + $0xa8] sm:$0xff]
    %v89 = vld [vmem:[%s1 + $0xb0] sm:$0xff]
    %v90 = vld [vmem:[%s1 + $0xb8] sm:$0xff]
    %v91 = vld [vmem:[%s1 + $0xc0] sm:$0xff]
    %v92 = vld [vmem:[%s1 + $0xc8] sm:$0xff]
    %v93 = vld [vmem:[%s1 + $0xd0] sm:$0xff]
    %v94 = vld [vmem:[%s1 + $0xd8] sm:$0xff]
    %v95 = vld [vmem:[%s1 + $0xe0] sm:$0xff]
    %v96 = vld [vmem:[%s1 + $0xe8] sm:$0xff]
    %v97 = vld [vmem:[%s1 + $0xf0] sm:$0xff]
    %v98 = vld [vmem:[%s1 + $0xf8] sm:$0xff]
    %v99 = vld [vmem:[%s2] sm:$0xff]
    %v101 = vlaneseq
    %v102 = vshrl.u32 %v101, 7
    %v103 = vsub.s32 0, %v102
    %v104 = vrot.slane %v99, %v103
    %v105 = vlaneseq
    %v106 = vshrl.u32 %v105, 7
    %v107 = vsub.s32 1, %v106
    %v108 = vrot.slane %v99, %v107
    %v109 = vlaneseq
    %v110 = vshrl.u32 %v109, 7
    %v111 = vsub.s32 2, %v110
    %v112 = vrot.slane %v99, %v111
    %v113 = vlaneseq
    %v114 = vshrl.u32 %v113, 7
    %v115 = vsub.s32 3, %v114
    %v116 = vrot.slane %v99, %v115
    %v117 = vlaneseq
    %v118 = vshrl.u32 %v117, 7
    %v119 = vsub.s32 4, %v118
    %v120 = vrot.slane %v99, %v119
    %v121 = vlaneseq
    %v122 = vshrl.u32 %v121, 7
    %v123 = vsub.s32 5, %v122
    %v124 = vrot.slane %v99, %v123
    %v125 = vlaneseq
    %v126 = vshrl.u32 %v125, 7
    %v127 = vsub.s32 6, %v126
    %v128 = vrot.slane %v99, %v127
    %v129 = vlaneseq
    %v130 = vshrl.u32 %v129, 7
    %v131 = vsub.s32 7, %v130
    %v132 = vrot.slane %v99, %v131
    %vm141 = vcmask 261120
    %v143 = vsel %vm141, %v61, 0
    %v146 = vsel %vm141, %v62, 0
    %148 = vmatprep.subr.mxu0 %v68
    %149 = vmatpush1.msra.mxu0 %v67
    %150 = vmatprep.subr.mxu0 %v76
    %151 = vmatpush1.msra.mxu0 %v75
    %152 = vmatprep.subr.mxu0 %v84
    %153 = vmatpush1.msra.mxu0 %v83
    %154 = vmatprep.subr.mxu0 %v92
    %155 = vmatpush1.msra.mxu0 %v91
    %156 = vmatprep.subr.mxu0 0.0
    %157 = vmatpush1.msra.mxu0 0.0
    %158 = vmatprep.subr.mxu0 0.0
    %159 = vmatpush1.msra.mxu0 0.0
    %160 = vmatprep.subr.mxu0 0.0
    %161 = vmatpush1.msra.mxu0 0.0
    %162 = vmatprep.subr.mxu0 0.0
    %163 = vmatpush1.msra.mxu0 0.0
    %164 = vmatprep.subr.mxu0 0.0
    %165 = vmatpush1.msra.mxu0 0.0
    %166 = vmatprep.subr.mxu0 0.0
    %167 = vmatpush1.msra.mxu0 0.0
    %168 = vmatprep.subr.mxu0 0.0
    %169 = vmatpush1.msra.mxu0 0.0
    %170 = vmatprep.subr.mxu0 0.0
    %171 = vmatpush1.msra.mxu0 0.0
    %172 = vmatprep.subr.mxu0 0.0
    %173 = vmatpush1.msra.mxu0 0.0
    %174 = vmatprep.subr.mxu0 0.0
    %175 = vmatpush1.msra.mxu0 0.0
    %176 = vmatprep.subr.mxu0 0.0
    %177 = vmatpush1.msra.mxu0 0.0
    %178 = vmatprep.subr.mxu0 0.0
    %179 = vmatpush1.msra.mxu0 0.0
    %180 = vmatprep.subr.mxu0 0.0
    %181 = vmatpush1.msra.mxu0 0.0
    %182 = vmatprep.subr.mxu0 0.0
    %183 = vmatpush1.msra.mxu0 0.0
    %184 = vmatprep.subr.mxu0 0.0
    %185 = vmatpush1.msra.mxu0 0.0
    %186 = vmatprep.subr.mxu0 0.0
    %187 = vmatpush1.msra.mxu0 0.0
    %188 = vmatprep.subr.mxu0 0.0
    %189 = vmatpush1.msra.mxu0 0.0
    %190 = vmatprep.subr.mxu0 0.0
    %191 = vmatpush1.msra.mxu0 0.0
    %192 = vmatprep.subr.mxu0 0.0
    %193 = vmatpush1.msra.mxu0 0.0
    %194 = vmatprep.subr.mxu0 0.0
    %195 = vmatpush1.msra.mxu0 0.0
    %196 = vmatprep.subr.mxu0 0.0
    %197 = vmatpush1.msra.mxu0 0.0
    %198 = vmatprep.subr.mxu0 0.0
    %199 = vmatpush1.msra.mxu0 0.0
    %200 = vmatprep.subr.mxu0 0.0
    %201 = vmatpush1.msra.mxu0 0.0
    %202 = vmatprep.subr.mxu0 0.0
    %203 = vmatpush1.msra.mxu0 0.0
    %204 = vmatprep.subr.mxu0 0.0
    %205 = vmatpush1.msra.mxu0 0.0
    %206 = vmatprep.subr.mxu0 0.0
    %207 = vmatpush1.msra.mxu0 0.0
    %208 = vmatprep.subr.mxu0 0.0
    %209 = vmatpush1.msra.mxu0 0.0
    %210 = vmatprep.subr.mxu0 0.0
    %211 = vmatpush1.msra.mxu0 0.0
    %212 = vmatprep.mubr.f32.mxu0 0.0
    %213 = vmatmul.mubr.f32.gmra.mrb[0].mxu0 %v143
    %v214 = vpop.f32.mrb[0].mxu0
    %v215 = vadd.f32 %v104, %v214
    %v216 = vpop.f32.mrb[0].mxu0
    %v217 = vadd.f32 %v108, %v216
    %218 = vmatprep.mubr.f32.mxu0 0.0
    %219 = vmatmul.mubr.f32.gmra.mrb[0].mxu0 %v146
    %v220 = vpop.f32.mrb[0].mxu0
    %v221 = vadd.f32 %v104, %v220
    %v222 = vpop.f32.mrb[0].mxu0
    %v223 = vadd.f32 %v108, %v222
    %224 = vdwg.mxu0
    %225 = vmatprep.subr.mxu0 %v70
    %226 = vmatpush1.msra.mxu0 %v69
    %227 = vmatprep.subr.mxu0 %v78
    %228 = vmatpush1.msra.mxu0 %v77
    %229 = vmatprep.subr.mxu0 %v86
    %230 = vmatpush1.msra.mxu0 %v85
    %231 = vmatprep.subr.mxu0 %v94
    %232 = vmatpush1.msra.mxu0 %v93
    %233 = vmatprep.subr.mxu0 0.0
    %234 = vmatpush1.msra.mxu0 0.0
    %235 = vmatprep.subr.mxu0 0.0
    %236 = vmatpush1.msra.mxu0 0.0
    %237 = vmatprep.subr.mxu0 0.0
    %238 = vmatpush1.msra.mxu0 0.0
    %239 = vmatprep.subr.mxu0 0.0
    %240 = vmatpush1.msra.mxu0 0.0
    %241 = vmatprep.subr.mxu0 0.0
    %242 = vmatpush1.msra.mxu0 0.0
    %243 = vmatprep.subr.mxu0 0.0
    %244 = vmatpush1.msra.mxu0 0.0
    %245 = vmatprep.subr.mxu0 0.0
    %246 = vmatpush1.msra.mxu0 0.0
    %247 = vmatprep.subr.mxu0 0.0
    %248 = vmatpush1.msra.mxu0 0.0
    %249 = vmatprep.subr.mxu0 0.0
    %250 = vmatpush1.msra.mxu0 0.0
    %251 = vmatprep.subr.mxu0 0.0
    %252 = vmatpush1.msra.mxu0 0.0
    %253 = vmatprep.subr.mxu0 0.0
    %254 = vmatpush1.msra.mxu0 0.0
    %255 = vmatprep.subr.mxu0 0.0
    %256 = vmatpush1.msra.mxu0 0.0
    %257 = vmatprep.subr.mxu0 0.0
    %258 = vmatpush1.msra.mxu0 0.0
    %259 = vmatprep.subr.mxu0 0.0
    %260 = vmatpush1.msra.mxu0 0.0
    %261 = vmatprep.subr.mxu0 0.0
    %262 = vmatpush1.msra.mxu0 0.0
    %263 = vmatprep.subr.mxu0 0.0
    %264 = vmatpush1.msra.mxu0 0.0
    %265 = vmatprep.subr.mxu0 0.0
    %266 = vmatpush1.msra.mxu0 0.0
    %267 = vmatprep.subr.mxu0 0.0
    %268 = vmatpush1.msra.mxu0 0.0
    %269 = vmatprep.subr.mxu0 0.0
    %270 = vmatpush1.msra.mxu0 0.0
    %271 = vmatprep.subr.mxu0 0.0
    %272 = vmatpush1.msra.mxu0 0.0
    %273 = vmatprep.subr.mxu0 0.0
    %274 = vmatpush1.msra.mxu0 0.0
    %275 = vmatprep.subr.mxu0 0.0
    %276 = vmatpush1.msra.mxu0 0.0
    %277 = vmatprep.subr.mxu0 0.0
    %278 = vmatpush1.msra.mxu0 0.0
    %279 = vmatprep.subr.mxu0 0.0
    %280 = vmatpush1.msra.mxu0 0.0
    %281 = vmatprep.subr.mxu0 0.0
    %282 = vmatpush1.msra.mxu0 0.0
    %283 = vmatprep.subr.mxu0 0.0
    %284 = vmatpush1.msra.mxu0 0.0
    %285 = vmatprep.subr.mxu0 0.0
    %286 = vmatpush1.msra.mxu0 0.0
    %287 = vmatprep.subr.mxu0 0.0
    %288 = vmatpush1.msra.mxu0 0.0
    %289 = vmatprep.mubr.f32.mxu0 0.0
    %290 = vmatmul.mubr.f32.gmra.mrb[0].mxu0 %v143
    %v291 = vpop.f32.mrb[0].mxu0
    %v292 = vadd.f32 %v112, %v291
    %v293 = vpop.f32.mrb[0].mxu0
    %v294 = vadd.f32 %v116, %v293
    %295 = vmatprep.mubr.f32.mxu0 0.0
    %296 = vmatmul.mubr.f32.gmra.mrb[0].mxu0 %v146
    %v297 = vpop.f32.mrb[0].mxu0
    %v298 = vadd.f32 %v112, %v297
    %v299 = vpop.f32.mrb[0].mxu0
    %v300 = vadd.f32 %v116, %v299
    %301 = vdwg.mxu0
    %302 = vmatprep.subr.mxu0 %v72
    %303 = vmatpush1.msra.mxu0 %v71
    %304 = vmatprep.subr.mxu0 %v80
    %305 = vmatpush1.msra.mxu0 %v79
    %306 = vmatprep.subr.mxu0 %v88
    %307 = vmatpush1.msra.mxu0 %v87
    %308 = vmatprep.subr.mxu0 %v96
    %309 = vmatpush1.msra.mxu0 %v95
    %310 = vmatprep.subr.mxu0 0.0
    %311 = vmatpush1.msra.mxu0 0.0
    %312 = vmatprep.subr.mxu0 0.0
    %313 = vmatpush1.msra.mxu0 0.0
    %314 = vmatprep.subr.mxu0 0.0
    %315 = vmatpush1.msra.mxu0 0.0
    %316 = vmatprep.subr.mxu0 0.0
    %317 = vmatpush1.msra.mxu0 0.0
    %318 = vmatprep.subr.mxu0 0.0
    %319 = vmatpush1.msra.mxu0 0.0
    %320 = vmatprep.subr.mxu0 0.0
    %321 = vmatpush1.msra.mxu0 0.0
    %322 = vmatprep.subr.mxu0 0.0
    %323 = vmatpush1.msra.mxu0 0.0
    %324 = vmatprep.subr.mxu0 0.0
    %325 = vmatpush1.msra.mxu0 0.0
    %326 = vmatprep.subr.mxu0 0.0
    %327 = vmatpush1.msra.mxu0 0.0
    %328 = vmatprep.subr.mxu0 0.0
    %329 = vmatpush1.msra.mxu0 0.0
    %330 = vmatprep.subr.mxu0 0.0
    %331 = vmatpush1.msra.mxu0 0.0
    %332 = vmatprep.subr.mxu0 0.0
    %333 = vmatpush1.msra.mxu0 0.0
    %334 = vmatprep.subr.mxu0 0.0
    %335 = vmatpush1.msra.mxu0 0.0
    %336 = vmatprep.subr.mxu0 0.0
    %337 = vmatpush1.msra.mxu0 0.0
    %338 = vmatprep.subr.mxu0 0.0
    %339 = vmatpush1.msra.mxu0 0.0
    %340 = vmatprep.subr.mxu0 0.0
    %341 = vmatpush1.msra.mxu0 0.0
    %342 = vmatprep.subr.mxu0 0.0
    %343 = vmatpush1.msra.mxu0 0.0
    %344 = vmatprep.subr.mxu0 0.0
    %345 = vmatpush1.msra.mxu0 0.0
    %346 = vmatprep.subr.mxu0 0.0
    %347 = vmatpush1.msra.mxu0 0.0
    %348 = vmatprep.subr.mxu0 0.0
    %349 = vmatpush1.msra.mxu0 0.0
    %350 = vmatprep.subr.mxu0 0.0
    %351 = vmatpush1.msra.mxu0 0.0
    %352 = vmatprep.subr.mxu0 0.0
    %353 = vmatpush1.msra.mxu0 0.0
    %354 = vmatprep.subr.mxu0 0.0
    %355 = vmatpush1.msra.mxu0 0.0
    %356 = vmatprep.subr.mxu0 0.0
    %357 = vmatpush1.msra.mxu0 0.0
    %358 = vmatprep.subr.mxu0 0.0
    %359 = vmatpush1.msra.mxu0 0.0
    %360 = vmatprep.subr.mxu0 0.0
    %361 = vmatpush1.msra.mxu0 0.0
    %362 = vmatprep.subr.mxu0 0.0
    %363 = vmatpush1.msra.mxu0 0.0
    %364 = vmatprep.subr.mxu0 0.0
    %365 = vmatpush1.msra.mxu0 0.0
    %366 = vmatprep.mubr.f32.mxu0 0.0
    %367 = vmatmul.mubr.f32.gmra.mrb[0].mxu0 %v143
    %v368 = vpop.f32.mrb[0].mxu0
    %v369 = vadd.f32 %v120, %v368
    %v370 = vpop.f32.mrb[0].mxu0
    %v371 = vadd.f32 %v124, %v370
    %372 = vmatprep.mubr.f32.mxu0 0.0
    %373 = vmatmul.mubr.f32.gmra.mrb[0].mxu0 %v146
    %v374 = vpop.f32.mrb[0].mxu0
    %v375 = vadd.f32 %v120, %v374
    %v376 = vpop.f32.mrb[0].mxu0
    %v377 = vadd.f32 %v124, %v376
    %378 = vdwg.mxu0
    %379 = vmatprep.subr.mxu0 %v74
    %380 = vmatpush1.msra.mxu0 %v73
    %381 = vmatprep.subr.mxu0 %v82
    %382 = vmatpush1.msra.mxu0 %v81
    %383 = vmatprep.subr.mxu0 %v90
    %384 = vmatpush1.msra.mxu0 %v89
    %385 = vmatprep.subr.mxu0 %v98
    %386 = vmatpush1.msra.mxu0 %v97
    %387 = vmatprep.subr.mxu0 0.0
    %388 = vmatpush1.msra.mxu0 0.0
    %389 = vmatprep.subr.mxu0 0.0
    %390 = vmatpush1.msra.mxu0 0.0
    %391 = vmatprep.subr.mxu0 0.0
    %392 = vmatpush1.msra.mxu0 0.0
    %393 = vmatprep.subr.mxu0 0.0
    %394 = vmatpush1.msra.mxu0 0.0
    %395 = vmatprep.subr.mxu0 0.0
    %396 = vmatpush1.msra.mxu0 0.0
    %397 = vmatprep.subr.mxu0 0.0
    %398 = vmatpush1.msra.mxu0 0.0
    %399 = vmatprep.subr.mxu0 0.0
    %400 = vmatpush1.msra.mxu0 0.0
    %401 = vmatprep.subr.mxu0 0.0
    %402 = vmatpush1.msra.mxu0 0.0
    %403 = vmatprep.subr.mxu0 0.0
    %404 = vmatpush1.msra.mxu0 0.0
    %405 = vmatprep.subr.mxu0 0.0
    %406 = vmatpush1.msra.mxu0 0.0
    %407 = vmatprep.subr.mxu0 0.0
    %408 = vmatpush1.msra.mxu0 0.0
    %409 = vmatprep.subr.mxu0 0.0
    %410 = vmatpush1.msra.mxu0 0.0
    %411 = vmatprep.subr.mxu0 0.0
    %412 = vmatpush1.msra.mxu0 0.0
    %413 = vmatprep.subr.mxu0 0.0
    %414 = vmatpush1.msra.mxu0 0.0
    %415 = vmatprep.subr.mxu0 0.0
    %416 = vmatpush1.msra.mxu0 0.0
    %417 = vmatprep.subr.mxu0 0.0
    %418 = vmatpush1.msra.mxu0 0.0
    %419 = vmatprep.subr.mxu0 0.0
    %420 = vmatpush1.msra.mxu0 0.0
    %421 = vmatprep.subr.mxu0 0.0
    %422 = vmatpush1.msra.mxu0 0.0
    %423 = vmatprep.subr.mxu0 0.0
    %424 = vmatpush1.msra.mxu0 0.0
    %425 = vmatprep.subr.mxu0 0.0
    %426 = vmatpush1.msra.mxu0 0.0
    %427 = vmatprep.subr.mxu0 0.0
    %428 = vmatpush1.msra.mxu0 0.0
    %429 = vmatprep.subr.mxu0 0.0
    %430 = vmatpush1.msra.mxu0 0.0
    %431 = vmatprep.subr.mxu0 0.0
    %432 = vmatpush1.msra.mxu0 0.0
    %433 = vmatprep.subr.mxu0 0.0
    %434 = vmatpush1.msra.mxu0 0.0
    %435 = vmatprep.subr.mxu0 0.0
    %436 = vmatpush1.msra.mxu0 0.0
    %437 = vmatprep.subr.mxu0 0.0
    %438 = vmatpush1.msra.mxu0 0.0
    %439 = vmatprep.subr.mxu0 0.0
    %440 = vmatpush1.msra.mxu0 0.0
    %441 = vmatprep.subr.mxu0 0.0
    %442 = vmatpush1.msra.mxu0 0.0
    %443 = vmatprep.mubr.f32.mxu0 0.0
    %444 = vmatmul.mubr.f32.gmra.mrb[0].mxu0 %v143
    %v445 = vpop.f32.mrb[0].mxu0
    %v446 = vadd.f32 %v128, %v445
    %v447 = vpop.f32.mrb[0].mxu0
    %v448 = vadd.f32 %v132, %v447
    %449 = vmatprep.mubr.f32.mxu0 0.0
    %450 = vmatmul.mubr.f32.gmra.mrb[0].mxu0 %v146
    %v451 = vpop.f32.mrb[0].mxu0
    %v452 = vadd.f32 %v128, %v451
    %v453 = vpop.f32.mrb[0].mxu0
    %v454 = vadd.f32 %v132, %v453
    %455 = vdwg.mxu0
    %v456 = vld [vmem:[#allocation2] sm:$0xff]
    %v457 = vld [vmem:[#allocation2 + $0x8] sm:$0xff]
    %v458 = vld [vmem:[#allocation2 + $0x10] sm:$0xff]
    %v459 = vld [vmem:[#allocation2 + $0x18] sm:$0xff]
    %v460 = vld [vmem:[#allocation2 + $0x20] sm:$0xff]
    %v461 = vld [vmem:[#allocation2 + $0x28] sm:$0xff]
    %v462 = vld [vmem:[#allocation2 + $0x30] sm:$0xff]
    %v463 = vld [vmem:[#allocation2 + $0x38] sm:$0xff]
    %v464 = vld [vmem:[#allocation2 + $0x40] sm:$0xff]
    %v465 = vld [vmem:[#allocation2 + $0x48] sm:$0xff]
    %v466 = vld [vmem:[#allocation2 + $0x50] sm:$0xff]
    %v467 = vld [vmem:[#allocation2 + $0x58] sm:$0xff]
    %v468 = vld [vmem:[#allocation2 + $0x60] sm:$0xff]
    %v469 = vld [vmem:[#allocation2 + $0x68] sm:$0xff]
    %v470 = vld [vmem:[#allocation2 + $0x70] sm:$0xff]
    %v471 = vld [vmem:[#allocation2 + $0x78] sm:$0xff]
    %v472 = vld [vmem:[#allocation2 + $0x80] sm:$0xff]
    %v473 = vld [vmem:[#allocation2 + $0x88] sm:$0xff]
    %v474 = vld [vmem:[#allocation2 + $0x90] sm:$0xff]
    %v475 = vld [vmem:[#allocation2 + $0x98] sm:$0xff]
    %v476 = vld [vmem:[#allocation2 + $0xa0] sm:$0xff]
    %v477 = vld [vmem:[#allocation2 + $0xa8] sm:$0xff]
    %v478 = vld [vmem:[#allocation2 + $0xb0] sm:$0xff]
    %v479 = vld [vmem:[#allocation2 + $0xb8] sm:$0xff]
    %v480 = vld [vmem:[#allocation2 + $0xc0] sm:$0xff]
    %v481 = vld [vmem:[#allocation2 + $0xc8] sm:$0xff]
    %v482 = vld [vmem:[#allocation2 + $0xd0] sm:$0xff]
    %v483 = vld [vmem:[#allocation2 + $0xd8] sm:$0xff]
    %v484 = vld [vmem:[#allocation2 + $0xe0] sm:$0xff]
    %v485 = vld [vmem:[#allocation2 + $0xe8] sm:$0xff]
    %v486 = vld [vmem:[#allocation2 + $0xf0] sm:$0xff]
    %v487 = vld [vmem:[#allocation2 + $0xf8] sm:$0xff]
    %v488 = vld [vmem:[%s4] sm:$0xff]
    %v490 = vlaneseq
    %v491 = vshrl.u32 %v490, 7
    %v492 = vsub.s32 0, %v491
    %v493 = vrot.slane %v488, %v492
    %v494 = vlaneseq
    %v495 = vshrl.u32 %v494, 7
    %v496 = vsub.s32 1, %v495
    %v497 = vrot.slane %v488, %v496
    %v498 = vlaneseq
    %v499 = vshrl.u32 %v498, 7
    %v500 = vsub.s32 2, %v499
    %v501 = vrot.slane %v488, %v500
    %v502 = vlaneseq
    %v503 = vshrl.u32 %v502, 7
    %v504 = vsub.s32 3, %v503
    %v505 = vrot.slane %v488, %v504
    %v506 = vlaneseq
    %v507 = vshrl.u32 %v506, 7
    %v508 = vsub.s32 4, %v507
    %v509 = vrot.slane %v488, %v508
    %v510 = vlaneseq
    %v511 = vshrl.u32 %v510, 7
    %v512 = vsub.s32 5, %v511
    %v513 = vrot.slane %v488, %v512
    %v514 = vlaneseq
    %v515 = vshrl.u32 %v514, 7
    %v516 = vsub.s32 6, %v515
    %v517 = vrot.slane %v488, %v516
    %v518 = vlaneseq
    %v519 = vshrl.u32 %v518, 7
    %v520 = vsub.s32 7, %v519
    %v521 = vrot.slane %v488, %v520
    %v531 = vsel %vm141, %v63, 0
    %v534 = vsel %vm141, %v64, 0
    %536 = vmatprep.subr.mxu0 %v457
    %537 = vmatpush1.msra.mxu0 %v456
    %538 = vmatprep.subr.mxu0 %v465
    %539 = vmatpush1.msra.mxu0 %v464
    %540 = vmatprep.subr.mxu0 %v473
    %541 = vmatpush1.msra.mxu0 %v472
    %542 = vmatprep.subr.mxu0 %v481
    %543 = vmatpush1.msra.mxu0 %v480
    %544 = vmatprep.subr.mxu0 0.0
    %545 = vmatpush1.msra.mxu0 0.0
    %546 = vmatprep.subr.mxu0 0.0
    %547 = vmatpush1.msra.mxu0 0.0
    %548 = vmatprep.subr.mxu0 0.0
    %549 = vmatpush1.msra.mxu0 0.0
    %550 = vmatprep.subr.mxu0 0.0
    %551 = vmatpush1.msra.mxu0 0.0
    %552 = vmatprep.subr.mxu0 0.0
    %553 = vmatpush1.msra.mxu0 0.0
    %554 = vmatprep.subr.mxu0 0.0
    %555 = vmatpush1.msra.mxu0 0.0
    %556 = vmatprep.subr.mxu0 0.0
    %557 = vmatpush1.msra.mxu0 0.0
    %558 = vmatprep.subr.mxu0 0.0
    %559 = vmatpush1.msra.mxu0 0.0
    %560 = vmatprep.subr.mxu0 0.0
    %561 = vmatpush1.msra.mxu0 0.0
    %562 = vmatprep.subr.mxu0 0.0
    %563 = vmatpush1.msra.mxu0 0.0
    %564 = vmatprep.subr.mxu0 0.0
    %565 = vmatpush1.msra.mxu0 0.0
    %566 = vmatprep.subr.mxu0 0.0
    %567 = vmatpush1.msra.mxu0 0.0
    %568 = vmatprep.subr.mxu0 0.0
    %569 = vmatpush1.msra.mxu0 0.0
    %570 = vmatprep.subr.mxu0 0.0
    %571 = vmatpush1.msra.mxu0 0.0
    %572 = vmatprep.subr.mxu0 0.0
    %573 = vmatpush1.msra.mxu0 0.0
    %574 = vmatprep.subr.mxu0 0.0
    %575 = vmatpush1.msra.mxu0 0.0
    %576 = vmatprep.subr.mxu0 0.0
    %577 = vmatpush1.msra.mxu0 0.0
    %578 = vmatprep.subr.mxu0 0.0
    %579 = vmatpush1.msra.mxu0 0.0
    %580 = vmatprep.subr.mxu0 0.0
    %581 = vmatpush1.msra.mxu0 0.0
    %582 = vmatprep.subr.mxu0 0.0
    %583 = vmatpush1.msra.mxu0 0.0
    %584 = vmatprep.subr.mxu0 0.0
    %585 = vmatpush1.msra.mxu0 0.0
    %586 = vmatprep.subr.mxu0 0.0
    %587 = vmatpush1.msra.mxu0 0.0
    %588 = vmatprep.subr.mxu0 0.0
    %589 = vmatpush1.msra.mxu0 0.0
    %590 = vmatprep.subr.mxu0 0.0
    %591 = vmatpush1.msra.mxu0 0.0
    %592 = vmatprep.subr.mxu0 0.0
    %593 = vmatpush1.msra.mxu0 0.0
    %594 = vmatprep.subr.mxu0 0.0
    %595 = vmatpush1.msra.mxu0 0.0
    %596 = vmatprep.subr.mxu0 0.0
    %597 = vmatpush1.msra.mxu0 0.0
    %598 = vmatprep.subr.mxu0 0.0
    %599 = vmatpush1.msra.mxu0 0.0
    %600 = vmatprep.mubr.f32.mxu0 0.0
    %601 = vmatmul.mubr.f32.gmra.mrb[0].mxu0 %v531
    %v602 = vpop.f32.mrb[0].mxu0
    %v603 = vadd.f32 %v493, %v602
    %v604 = vpop.f32.mrb[0].mxu0
    %v605 = vadd.f32 %v497, %v604
    %606 = vmatprep.mubr.f32.mxu0 0.0
    %607 = vmatmul.mubr.f32.gmra.mrb[0].mxu0 %v534
    %v608 = vpop.f32.mrb[0].mxu0
    %v609 = vadd.f32 %v493, %v608
    %v610 = vpop.f32.mrb[0].mxu0
    %v611 = vadd.f32 %v497, %v610
    %612 = vdwg.mxu0
    %613 = vmatprep.subr.mxu0 %v459
    %614 = vmatpush1.msra.mxu0 %v458
    %615 = vmatprep.subr.mxu0 %v467
    %616 = vmatpush1.msra.mxu0 %v466
    %617 = vmatprep.subr.mxu0 %v475
    %618 = vmatpush1.msra.mxu0 %v474
    %619 = vmatprep.subr.mxu0 %v483
    %620 = vmatpush1.msra.mxu0 %v482
    %621 = vmatprep.subr.mxu0 0.0
    %622 = vmatpush1.msra.mxu0 0.0
    %623 = vmatprep.subr.mxu0 0.0
    %624 = vmatpush1.msra.mxu0 0.0
    %625 = vmatprep.subr.mxu0 0.0
    %626 = vmatpush1.msra.mxu0 0.0
    %627 = vmatprep.subr.mxu0 0.0
    %628 = vmatpush1.msra.mxu0 0.0
    %629 = vmatprep.subr.mxu0 0.0
    %630 = vmatpush1.msra.mxu0 0.0
    %631 = vmatprep.subr.mxu0 0.0
    %632 = vmatpush1.msra.mxu0 0.0
    %633 = vmatprep.subr.mxu0 0.0
    %634 = vmatpush1.msra.mxu0 0.0
    %635 = vmatprep.subr.mxu0 0.0
    %636 = vmatpush1.msra.mxu0 0.0
    %637 = vmatprep.subr.mxu0 0.0
    %638 = vmatpush1.msra.mxu0 0.0
    %639 = vmatprep.subr.mxu0 0.0
    %640 = vmatpush1.msra.mxu0 0.0
    %641 = vmatprep.subr.mxu0 0.0
    %642 = vmatpush1.msra.mxu0 0.0
    %643 = vmatprep.subr.mxu0 0.0
    %644 = vmatpush1.msra.mxu0 0.0
    %645 = vmatprep.subr.mxu0 0.0
    %646 = vmatpush1.msra.mxu0 0.0
    %647 = vmatprep.subr.mxu0 0.0
    %648 = vmatpush1.msra.mxu0 0.0
    %649 = vmatprep.subr.mxu0 0.0
    %650 = vmatpush1.msra.mxu0 0.0
    %651 = vmatprep.subr.mxu0 0.0
    %652 = vmatpush1.msra.mxu0 0.0
    %653 = vmatprep.subr.mxu0 0.0
    %654 = vmatpush1.msra.mxu0 0.0
    %655 = vmatprep.subr.mxu0 0.0
    %656 = vmatpush1.msra.mxu0 0.0
    %657 = vmatprep.subr.mxu0 0.0
    %658 = vmatpush1.msra.mxu0 0.0
    %659 = vmatprep.subr.mxu0 0.0
    %660 = vmatpush1.msra.mxu0 0.0
    %661 = vmatprep.subr.mxu0 0.0
    %662 = vmatpush1.msra.mxu0 0.0
    %663 = vmatprep.subr.mxu0 0.0
    %664 = vmatpush1.msra.mxu0 0.0
    %665 = vmatprep.subr.mxu0 0.0
    %666 = vmatpush1.msra.mxu0 0.0
    %667 = vmatprep.subr.mxu0 0.0
    %668 = vmatpush1.msra.mxu0 0.0
    %669 = vmatprep.subr.mxu0 0.0
    %670 = vmatpush1.msra.mxu0 0.0
    %671 = vmatprep.subr.mxu0 0.0
    %672 = vmatpush1.msra.mxu0 0.0
    %673 = vmatprep.subr.mxu0 0.0
    %674 = vmatpush1.msra.mxu0 0.0
    %675 = vmatprep.subr.mxu0 0.0
    %676 = vmatpush1.msra.mxu0 0.0
    %677 = vmatprep.mubr.f32.mxu0 0.0
    %678 = vmatmul.mubr.f32.gmra.mrb[0].mxu0 %v531
    %v679 = vpop.f32.mrb[0].mxu0
    %v680 = vadd.f32 %v501, %v679
    %v681 = vpop.f32.mrb[0].mxu0
    %v682 = vadd.f32 %v505, %v681
    %683 = vmatprep.mubr.f32.mxu0 0.0
    %684 = vmatmul.mubr.f32.gmra.mrb[0].mxu0 %v534
    %v685 = vpop.f32.mrb[0].mxu0
    %v686 = vadd.f32 %v501, %v685
    %v687 = vpop.f32.mrb[0].mxu0
    %v688 = vadd.f32 %v505, %v687
    %689 = vdwg.mxu0
    %690 = vmatprep.subr.mxu0 %v461
    %691 = vmatpush1.msra.mxu0 %v460
    %692 = vmatprep.subr.mxu0 %v469
    %693 = vmatpush1.msra.mxu0 %v468
    %694 = vmatprep.subr.mxu0 %v477
    %695 = vmatpush1.msra.mxu0 %v476
    %696 = vmatprep.subr.mxu0 %v485
    %697 = vmatpush1.msra.mxu0 %v484
    %698 = vmatprep.subr.mxu0 0.0
    %699 = vmatpush1.msra.mxu0 0.0
    %700 = vmatprep.subr.mxu0 0.0
    %701 = vmatpush1.msra.mxu0 0.0
    %702 = vmatprep.subr.mxu0 0.0
    %703 = vmatpush1.msra.mxu0 0.0
    %704 = vmatprep.subr.mxu0 0.0
    %705 = vmatpush1.msra.mxu0 0.0
    %706 = vmatprep.subr.mxu0 0.0
    %707 = vmatpush1.msra.mxu0 0.0
    %708 = vmatprep.subr.mxu0 0.0
    %709 = vmatpush1.msra.mxu0 0.0
    %710 = vmatprep.subr.mxu0 0.0
    %711 = vmatpush1.msra.mxu0 0.0
    %712 = vmatprep.subr.mxu0 0.0
    %713 = vmatpush1.msra.mxu0 0.0
    %714 = vmatprep.subr.mxu0 0.0
    %715 = vmatpush1.msra.mxu0 0.0
    %716 = vmatprep.subr.mxu0 0.0
    %717 = vmatpush1.msra.mxu0 0.0
    %718 = vmatprep.subr.mxu0 0.0
    %719 = vmatpush1.msra.mxu0 0.0
    %720 = vmatprep.subr.mxu0 0.0
    %721 = vmatpush1.msra.mxu0 0.0
    %722 = vmatprep.subr.mxu0 0.0
    %723 = vmatpush1.msra.mxu0 0.0
    %724 = vmatprep.subr.mxu0 0.0
    %725 = vmatpush1.msra.mxu0 0.0
    %726 = vmatprep.subr.mxu0 0.0
    %727 = vmatpush1.msra.mxu0 0.0
    %728 = vmatprep.subr.mxu0 0.0
    %729 = vmatpush1.msra.mxu0 0.0
    %730 = vmatprep.subr.mxu0 0.0
    %731 = vmatpush1.msra.mxu0 0.0
    %732 = vmatprep.subr.mxu0 0.0
    %733 = vmatpush1.msra.mxu0 0.0
    %734 = vmatprep.subr.mxu0 0.0
    %735 = vmatpush1.msra.mxu0 0.0
    %736 = vmatprep.subr.mxu0 0.0
    %737 = vmatpush1.msra.mxu0 0.0
    %738 = vmatprep.subr.mxu0 0.0
    %739 = vmatpush1.msra.mxu0 0.0
    %740 = vmatprep.subr.mxu0 0.0
    %741 = vmatpush1.msra.mxu0 0.0
    %742 = vmatprep.subr.mxu0 0.0
    %743 = vmatpush1.msra.mxu0 0.0
    %744 = vmatprep.subr.mxu0 0.0
    %745 = vmatpush1.msra.mxu0 0.0
    %746 = vmatprep.subr.mxu0 0.0
    %747 = vmatpush1.msra.mxu0 0.0
    %748 = vmatprep.subr.mxu0 0.0
    %749 = vmatpush1.msra.mxu0 0.0
    %750 = vmatprep.subr.mxu0 0.0
    %751 = vmatpush1.msra.mxu0 0.0
    %752 = vmatprep.subr.mxu0 0.0
    %753 = vmatpush1.msra.mxu0 0.0
    %754 = vmatprep.mubr.f32.mxu0 0.0
    %755 = vmatmul.mubr.f32.gmra.mrb[0].mxu0 %v531
    %v756 = vpop.f32.mrb[0].mxu0
    %v757 = vadd.f32 %v509, %v756
    %v758 = vpop.f32.mrb[0].mxu0
    %v759 = vadd.f32 %v513, %v758
    %760 = vmatprep.mubr.f32.mxu0 0.0
    %761 = vmatmul.mubr.f32.gmra.mrb[0].mxu0 %v534
    %v762 = vpop.f32.mrb[0].mxu0
    %v763 = vadd.f32 %v509, %v762
    %v764 = vpop.f32.mrb[0].mxu0
    %v765 = vadd.f32 %v513, %v764
    %766 = vdwg.mxu0
    %767 = vmatprep.subr.mxu0 %v463
    %768 = vmatpush1.msra.mxu0 %v462
    %769 = vmatprep.subr.mxu0 %v471
    %770 = vmatpush1.msra.mxu0 %v470
    %771 = vmatprep.subr.mxu0 %v479
    %772 = vmatpush1.msra.mxu0 %v478
    %773 = vmatprep.subr.mxu0 %v487
    %774 = vmatpush1.msra.mxu0 %v486
    %775 = vmatprep.subr.mxu0 0.0
    %776 = vmatpush1.msra.mxu0 0.0
    %777 = vmatprep.subr.mxu0 0.0
    %778 = vmatpush1.msra.mxu0 0.0
    %779 = vmatprep.subr.mxu0 0.0
    %780 = vmatpush1.msra.mxu0 0.0
    %781 = vmatprep.subr.mxu0 0.0
    %782 = vmatpush1.msra.mxu0 0.0
    %783 = vmatprep.subr.mxu0 0.0
    %784 = vmatpush1.msra.mxu0 0.0
    %785 = vmatprep.subr.mxu0 0.0
    %786 = vmatpush1.msra.mxu0 0.0
    %787 = vmatprep.subr.mxu0 0.0
    %788 = vmatpush1.msra.mxu0 0.0
    %789 = vmatprep.subr.mxu0 0.0
    %790 = vmatpush1.msra.mxu0 0.0
    %791 = vmatprep.subr.mxu0 0.0
    %792 = vmatpush1.msra.mxu0 0.0
    %793 = vmatprep.subr.mxu0 0.0
    %794 = vmatpush1.msra.mxu0 0.0
    %795 = vmatprep.subr.mxu0 0.0
    %796 = vmatpush1.msra.mxu0 0.0
    %797 = vmatprep.subr.mxu0 0.0
    %798 = vmatpush1.msra.mxu0 0.0
    %799 = vmatprep.subr.mxu0 0.0
    %800 = vmatpush1.msra.mxu0 0.0
    %801 = vmatprep.subr.mxu0 0.0
    %802 = vmatpush1.msra.mxu0 0.0
    %803 = vmatprep.subr.mxu0 0.0
    %804 = vmatpush1.msra.mxu0 0.0
    %805 = vmatprep.subr.mxu0 0.0
    %806 = vmatpush1.msra.mxu0 0.0
    %807 = vmatprep.subr.mxu0 0.0
    %808 = vmatpush1.msra.mxu0 0.0
    %809 = vmatprep.subr.mxu0 0.0
    %810 = vmatpush1.msra.mxu0 0.0
    %811 = vmatprep.subr.mxu0 0.0
    %812 = vmatpush1.msra.mxu0 0.0
    %813 = vmatprep.subr.mxu0 0.0
    %814 = vmatpush1.msra.mxu0 0.0
    %815 = vmatprep.subr.mxu0 0.0
    %816 = vmatpush1.msra.mxu0 0.0
    %817 = vmatprep.subr.mxu0 0.0
    %818 = vmatpush1.msra.mxu0 0.0
    %819 = vmatprep.subr.mxu0 0.0
    %820 = vmatpush1.msra.mxu0 0.0
    %821 = vmatprep.subr.mxu0 0.0
    %822 = vmatpush1.msra.mxu0 0.0
    %823 = vmatprep.subr.mxu0 0.0
    %824 = vmatpush1.msra.mxu0 0.0
    %825 = vmatprep.subr.mxu0 0.0
    %826 = vmatpush1.msra.mxu0 0.0
    %827 = vmatprep.subr.mxu0 0.0
    %828 = vmatpush1.msra.mxu0 0.0
    %829 = vmatprep.subr.mxu0 0.0
    %830 = vmatpush1.msra.mxu0 0.0
    %831 = vmatprep.mubr.f32.mxu0 0.0
    %832 = vmatmul.mubr.f32.gmra.mrb[0].mxu0 %v531
    %v833 = vpop.f32.mrb[0].mxu0
    %v834 = vadd.f32 %v517, %v833
    %v835 = vpop.f32.mrb[0].mxu0
    %v836 = vadd.f32 %v521, %v835
    %837 = vmatprep.mubr.f32.mxu0 0.0
    %838 = vmatmul.mubr.f32.gmra.mrb[0].mxu0 %v534
    %v839 = vpop.f32.mrb[0].mxu0
    %v840 = vadd.f32 %v517, %v839
    %v841 = vpop.f32.mrb[0].mxu0
    %v842 = vadd.f32 %v521, %v841
    %843 = vdwg.mxu0
    %v844 = vmul.f32 %v215, %v603
    %v845 = vmul.f32 %v217, %v605
    %v846 = vmul.f32 %v292, %v680
    %v847 = vmul.f32 %v294, %v682
    %v848 = vmul.f32 %v369, %v757
    %v849 = vmul.f32 %v371, %v759
    %v850 = vmul.f32 %v446, %v834
    %v851 = vmul.f32 %v448, %v836
    %v852 = vmul.f32 %v221, %v609
    %v853 = vmul.f32 %v223, %v611
    %v854 = vmul.f32 %v298, %v686
    %v855 = vmul.f32 %v300, %v688
    %v856 = vmul.f32 %v375, %v763
    %v857 = vmul.f32 %v377, %v765
    %v858 = vmul.f32 %v452, %v840
    %v859 = vmul.f32 %v454, %v842
    %v860 = vadd.f32 %v844, %v846
    %v861 = vadd.f32 %v845, %v847
    %v862 = vadd.f32 %v852, %v854
    %v863 = vadd.f32 %v853, %v855
    %v864 = vadd.f32 %v848, %v850
    %v865 = vadd.f32 %v849, %v851
    %v866 = vadd.f32 %v856, %v858
    %v867 = vadd.f32 %v857, %v859
    %v868 = vadd.f32 %v860, %v864
    %v869 = vadd.f32 %v861, %v865
    %v870 = vadd.f32 %v862, %v866
    %v871 = vadd.f32 %v863, %v867
    %vm872 = vcmask 523264
    %v873 = vsel %vm872, %v869, -inf
    %v874 = vmax.f32 %v868, %v873
    %875 = vmax.xlane.f32.xlu0 %v874
    %v876 = vpop.xlane.xlu0 %875
    %v877 = vsel %vm872, %v871, -inf
    %v878 = vmax.f32 %v870, %v877
    %879 = vmax.xlane.f32.xlu0 %v878
    %v880 = vpop.xlane.xlu0 %879
    %v881 = vsub.f32 %v868, %v876
    %v882 = vsub.f32 %v869, %v876
    %v883 = vsub.f32 %v870, %v880
    %v884 = vsub.f32 %v871, %v880
    %v885 = vmul.f32 %v881, 1.442695
    %v886 = vpow.pop %v885
    %v887 = vmul.f32 %v882, 1.442695
    %v888 = vpow.pop %v887
    %v889 = vmul.f32 %v883, 1.442695
    %v890 = vpow.pop %v889
    %v891 = vmul.f32 %v884, 1.442695
    %v892 = vpow.pop %v891
    %v893 = vlaneseq
    %v894 = vshrl.u32 %v893, 7
    %v895 = vadd.s32 %v894, 8
    %v896 = vadd.s32 %v894, 16
    %v897 = vadd.s32 %v894, 24
    %v898 = vadd.s32 %v894, 32
    %v899 = vadd.s32 %v894, 40
    %v900 = vadd.s32 %v894, 48
    %v901 = vadd.s32 %v894, 56
    %v902 = vadd.s32 %v894, 64
    %v903 = vadd.s32 %v894, 72
    %v904 = vadd.s32 %v894, 80
    %v905 = vadd.s32 %v894, 88
    %v906 = vadd.s32 %v894, 96
    %v907 = vadd.s32 %v894, 104
    %v908 = vadd.s32 %v894, 112
    %v909 = vadd.s32 %v894, 120
    %v910 = vadd.s32 %v894, 128
    %v911 = vadd.s32 %v894, 136
    %v912 = vadd.s32 %v894, 144
    %v913 = vadd.s32 %v894, 152
    %v914 = vadd.s32 %v894, 160
    %v915 = vadd.s32 %v894, 168
    %v916 = vadd.s32 %v894, 176
    %v917 = vadd.s32 %v894, 184
    %v918 = vlaneseq
    %v919 = vand.u32 %v918, 127
    %v920 = vadd.s32 %v919, 128
    %v921 = vadd.s32 %v919, 256
    %v922 = vadd.s32 %v919, 384
    %v923 = vadd.s32 %v919, 512
    %v924 = vadd.s32 %v919, 640
    %v925 = vadd.s32 %v919, 768
    %v926 = vadd.s32 %v919, 896
    %v927 = vshra.s32 %v894, 3
    %v928 = vshra.s32 %v895, 3
    %v929 = vshra.s32 %v896, 3
    %v930 = vshra.s32 %v897, 3
    %v931 = vshra.s32 %v898, 3
    %v932 = vshra.s32 %v899, 3
    %v933 = vshra.s32 %v900, 3
    %v934 = vshra.s32 %v901, 3
    %v935 = vshra.s32 %v902, 3
    %v936 = vshra.s32 %v903, 3
    %v937 = vshra.s32 %v904, 3
    %v938 = vshra.s32 %v905, 3
    %v939 = vshra.s32 %v906, 3
    %v940 = vshra.s32 %v907, 3
    %v941 = vshra.s32 %v908, 3
    %v942 = vshra.s32 %v909, 3
    %v943 = vshra.s32 %v910, 3
    %v944 = vshra.s32 %v911, 3
    %v945 = vshra.s32 %v912, 3
    %v946 = vshra.s32 %v913, 3
    %v947 = vshra.s32 %v914, 3
    %v948 = vshra.s32 %v915, 3
    %v949 = vshra.s32 %v916, 3
    %v950 = vshra.s32 %v917, 3
    %v951 = vand.u32 %v919, 127
    %v952 = vand.u32 %v920, 127
    %v953 = vand.u32 %v921, 127
    %v954 = vand.u32 %v922, 127
    %v955 = vand.u32 %v923, 127
    %v956 = vand.u32 %v924, 127
    %v957 = vand.u32 %v925, 127
    %v958 = vand.u32 %v926, 127
    %v959 = vshra.s32 %v951, 2
    %v960 = vshra.s32 %v952, 2
    %v961 = vshra.s32 %v953, 2
    %v962 = vshra.s32 %v954, 2
    %v963 = vshra.s32 %v955, 2
    %v964 = vshra.s32 %v956, 2
    %v965 = vshra.s32 %v957, 2
    %v966 = vshra.s32 %v958, 2
    %vm967 = vcmp.eq.s32.totalorder %v927, %v959
    %vm968 = vcmp.eq.s32.totalorder %v927, %v960
    %vm969 = vcmp.eq.s32.totalorder %v927, %v961
    %vm970 = vcmp.eq.s32.totalorder %v927, %v962
    %vm971 = vcmp.eq.s32.totalorder %v927, %v963
    %vm972 = vcmp.eq.s32.totalorder %v927, %v964
    %vm973 = vcmp.eq.s32.totalorder %v927, %v965
    %vm974 = vcmp.eq.s32.totalorder %v927, %v966
    %vm975 = vcmp.eq.s32.totalorder %v928, %v959
    %vm976 = vcmp.eq.s32.totalorder %v928, %v960
    %vm977 = vcmp.eq.s32.totalorder %v928, %v961
    %vm978 = vcmp.eq.s32.totalorder %v928, %v962
    %vm979 = vcmp.eq.s32.totalorder %v928, %v963
    %vm980 = vcmp.eq.s32.totalorder %v928, %v964
    %vm981 = vcmp.eq.s32.totalorder %v928, %v965
    %vm982 = vcmp.eq.s32.totalorder %v928, %v966
    %vm983 = vcmp.eq.s32.totalorder %v929, %v959
    %vm984 = vcmp.eq.s32.totalorder %v929, %v960
    %vm985 = vcmp.eq.s32.totalorder %v929, %v961
    %vm986 = vcmp.eq.s32.totalorder %v929, %v962
    %vm987 = vcmp.eq.s32.totalorder %v929, %v963
    %vm988 = vcmp.eq.s32.totalorder %v929, %v964
    %vm989 = vcmp.eq.s32.totalorder %v929, %v965
    %vm990 = vcmp.eq.s32.totalorder %v929, %v966
    %vm991 = vcmp.eq.s32.totalorder %v930, %v959
    %vm992 = vcmp.eq.s32.totalorder %v930, %v960
    %vm993 = vcmp.eq.s32.totalorder %v930, %v961
    %vm994 = vcmp.eq.s32.totalorder %v930, %v962
    %vm995 = vcmp.eq.s32.totalorder %v930, %v963
    %vm996 = vcmp.eq.s32.totalorder %v930, %v964
    %vm997 = vcmp.eq.s32.totalorder %v930, %v965
    %vm998 = vcmp.eq.s32.totalorder %v930, %v966
    %vm999 = vcmp.eq.s32.totalorder %v931, %v959
    %vm1000 = vcmp.eq.s32.totalorder %v931, %v960
    %vm1001 = vcmp.eq.s32.totalorder %v931, %v961
    %vm1002 = vcmp.eq.s32.totalorder %v931, %v962
    %vm1003 = vcmp.eq.s32.totalorder %v931, %v963
    %vm1004 = vcmp.eq.s32.totalorder %v931, %v964
    %vm1005 = vcmp.eq.s32.totalorder %v931, %v965
    %vm1006 = vcmp.eq.s32.totalorder %v931, %v966
    %vm1007 = vcmp.eq.s32.totalorder %v932, %v959
    %vm1008 = vcmp.eq.s32.totalorder %v932, %v960
    %vm1009 = vcmp.eq.s32.totalorder %v932, %v961
    %vm1010 = vcmp.eq.s32.totalorder %v932, %v962
    %vm1011 = vcmp.eq.s32.totalorder %v932, %v963
    %vm1012 = vcmp.eq.s32.totalorder %v932, %v964
    %vm1013 = vcmp.eq.s32.totalorder %v932, %v965
    %vm1014 = vcmp.eq.s32.totalorder %v932, %v966
    %vm1015 = vcmp.eq.s32.totalorder %v933, %v959
    %vm1016 = vcmp.eq.s32.totalorder %v933, %v960
    %vm1017 = vcmp.eq.s32.totalorder %v933, %v961
    %vm1018 = vcmp.eq.s32.totalorder %v933, %v962
    %vm1019 = vcmp.eq.s32.totalorder %v933, %v963
    %vm1020 = vcmp.eq.s32.totalorder %v933, %v964
    %vm1021 = vcmp.eq.s32.totalorder %v933, %v965
    %vm1022 = vcmp.eq.s32.totalorder %v933, %v966
    %vm1023 = vcmp.eq.s32.totalorder %v934, %v959
    %vm1024 = vcmp.eq.s32.totalorder %v934, %v960
    %vm1025 = vcmp.eq.s32.totalorder %v934, %v961
    %vm1026 = vcmp.eq.s32.totalorder %v934, %v962
    %vm1027 = vcmp.eq.s32.totalorder %v934, %v963
    %vm1028 = vcmp.eq.s32.totalorder %v934, %v964
    %vm1029 = vcmp.eq.s32.totalorder %v934, %v965
    %vm1030 = vcmp.eq.s32.totalorder %v934, %v966
    %vm1031 = vcmp.eq.s32.totalorder %v935, %v959
    %vm1032 = vcmp.eq.s32.totalorder %v935, %v960
    %vm1033 = vcmp.eq.s32.totalorder %v935, %v961
    %vm1034 = vcmp.eq.s32.totalorder %v935, %v962
    %vm1035 = vcmp.eq.s32.totalorder %v935, %v963
    %vm1036 = vcmp.eq.s32.totalorder %v935, %v964
    %vm1037 = vcmp.eq.s32.totalorder %v935, %v965
    %vm1038 = vcmp.eq.s32.totalorder %v935, %v966
    %vm1039 = vcmp.eq.s32.totalorder %v936, %v959
    %vm1040 = vcmp.eq.s32.totalorder %v936, %v960
    %vm1041 = vcmp.eq.s32.totalorder %v936, %v961
    %vm1042 = vcmp.eq.s32.totalorder %v936, %v962
    %vm1043 = vcmp.eq.s32.totalorder %v936, %v963
    %vm1044 = vcmp.eq.s32.totalorder %v936, %v964
    %vm1045 = vcmp.eq.s32.totalorder %v936, %v965
    %vm1046 = vcmp.eq.s32.totalorder %v936, %v966
    %vm1047 = vcmp.eq.s32.totalorder %v937, %v959
    %vm1048 = vcmp.eq.s32.totalorder %v937, %v960
    %vm1049 = vcmp.eq.s32.totalorder %v937, %v961
    %vm1050 = vcmp.eq.s32.totalorder %v937, %v962
    %vm1051 = vcmp.eq.s32.totalorder %v937, %v963
    %vm1052 = vcmp.eq.s32.totalorder %v937, %v964
    %vm1053 = vcmp.eq.s32.totalorder %v937, %v965
    %vm1054 = vcmp.eq.s32.totalorder %v937, %v966
    %vm1055 = vcmp.eq.s32.totalorder %v938, %v959
    %vm1056 = vcmp.eq.s32.totalorder %v938, %v960
    %vm1057 = vcmp.eq.s32.totalorder %v938, %v961
    %vm1058 = vcmp.eq.s32.totalorder %v938, %v962
    %vm1059 = vcmp.eq.s32.totalorder %v938, %v963
    %vm1060 = vcmp.eq.s32.totalorder %v938, %v964
    %vm1061 = vcmp.eq.s32.totalorder %v938, %v965
    %vm1062 = vcmp.eq.s32.totalorder %v938, %v966
    %vm1063 = vcmp.eq.s32.totalorder %v939, %v959
    %vm1064 = vcmp.eq.s32.totalorder %v939, %v960
    %vm1065 = vcmp.eq.s32.totalorder %v939, %v961
    %vm1066 = vcmp.eq.s32.totalorder %v939, %v962
    %vm1067 = vcmp.eq.s32.totalorder %v939, %v963
    %vm1068 = vcmp.eq.s32.totalorder %v939, %v964
    %vm1069 = vcmp.eq.s32.totalorder %v939, %v965
    %vm1070 = vcmp.eq.s32.totalorder %v939, %v966
    %vm1071 = vcmp.eq.s32.totalorder %v940, %v959
    %vm1072 = vcmp.eq.s32.totalorder %v940, %v960
    %vm1073 = vcmp.eq.s32.totalorder %v940, %v961
    %vm1074 = vcmp.eq.s32.totalorder %v940, %v962
    %vm1075 = vcmp.eq.s32.totalorder %v940, %v963
    %vm1076 = vcmp.eq.s32.totalorder %v940, %v964
    %vm1077 = vcmp.eq.s32.totalorder %v940, %v965
    %vm1078 = vcmp.eq.s32.totalorder %v940, %v966
    %vm1079 = vcmp.eq.s32.totalorder %v941, %v959
    %vm1080 = vcmp.eq.s32.totalorder %v941, %v960
    %vm1081 = vcmp.eq.s32.totalorder %v941, %v961
    %vm1082 = vcmp.eq.s32.totalorder %v941, %v962
    %vm1083 = vcmp.eq.s32.totalorder %v941, %v963
    %vm1084 = vcmp.eq.s32.totalorder %v941, %v964
    %vm1085 = vcmp.eq.s32.totalorder %v941, %v965
    %vm1086 = vcmp.eq.s32.totalorder %v941, %v966
    %vm1087 = vcmp.eq.s32.totalorder %v942, %v959
    %vm1088 = vcmp.eq.s32.totalorder %v942, %v960
    %vm1089 = vcmp.eq.s32.totalorder %v942, %v961
    %vm1090 = vcmp.eq.s32.totalorder %v942, %v962
    %vm1091 = vcmp.eq.s32.totalorder %v942, %v963
    %vm1092 = vcmp.eq.s32.totalorder %v942, %v964
    %vm1093 = vcmp.eq.s32.totalorder %v942, %v965
    %vm1094 = vcmp.eq.s32.totalorder %v942, %v966
    %vm1095 = vcmp.eq.s32.totalorder %v943, %v959
    %vm1096 = vcmp.eq.s32.totalorder %v943, %v960
    %vm1097 = vcmp.eq.s32.totalorder %v943, %v961
    %vm1098 = vcmp.eq.s32.totalorder %v943, %v962
    %vm1099 = vcmp.eq.s32.totalorder %v943, %v963
    %vm1100 = vcmp.eq.s32.totalorder %v943, %v964
    %vm1101 = vcmp.eq.s32.totalorder %v943, %v965
    %vm1102 = vcmp.eq.s32.totalorder %v943, %v966
    %vm1103 = vcmp.eq.s32.totalorder %v944, %v959
    %vm1104 = vcmp.eq.s32.totalorder %v944, %v960
    %vm1105 = vcmp.eq.s32.totalorder %v944, %v961
    %vm1106 = vcmp.eq.s32.totalorder %v944, %v962
    %vm1107 = vcmp.eq.s32.totalorder %v944, %v963
    %vm1108 = vcmp.eq.s32.totalorder %v944, %v964
    %vm1109 = vcmp.eq.s32.totalorder %v944, %v965
    %vm1110 = vcmp.eq.s32.totalorder %v944, %v966
    %vm1111 = vcmp.eq.s32.totalorder %v945, %v959
    %vm1112 = vcmp.eq.s32.totalorder %v945, %v960
    %vm1113 = vcmp.eq.s32.totalorder %v945, %v961
    %vm1114 = vcmp.eq.s32.totalorder %v945, %v962
    %vm1115 = vcmp.eq.s32.totalorder %v945, %v963
    %vm1116 = vcmp.eq.s32.totalorder %v945, %v964
    %vm1117 = vcmp.eq.s32.totalorder %v945, %v965
    %vm1118 = vcmp.eq.s32.totalorder %v945, %v966
    %vm1119 = vcmp.eq.s32.totalorder %v946, %v959
    %vm1120 = vcmp.eq.s32.totalorder %v946, %v960
    %vm1121 = vcmp.eq.s32.totalorder %v946, %v961
    %vm1122 = vcmp.eq.s32.totalorder %v946, %v962
    %vm1123 = vcmp.eq.s32.totalorder %v946, %v963
    %vm1124 = vcmp.eq.s32.totalorder %v946, %v964
    %vm1125 = vcmp.eq.s32.totalorder %v946, %v965
    %vm1126 = vcmp.eq.s32.totalorder %v946, %v966
    %vm1127 = vcmp.eq.s32.totalorder %v947, %v959
    %vm1128 = vcmp.eq.s32.totalorder %v947, %v960
    %vm1129 = vcmp.eq.s32.totalorder %v947, %v961
    %vm1130 = vcmp.eq.s32.totalorder %v947, %v962
    %vm1131 = vcmp.eq.s32.totalorder %v947, %v963
    %vm1132 = vcmp.eq.s32.totalorder %v947, %v964
    %vm1133 = vcmp.eq.s32.totalorder %v947, %v965
    %vm1134 = vcmp.eq.s32.totalorder %v947, %v966
    %vm1135 = vcmp.eq.s32.totalorder %v948, %v959
    %vm1136 = vcmp.eq.s32.totalorder %v948, %v960
    %vm1137 = vcmp.eq.s32.totalorder %v948, %v961
    %vm1138 = vcmp.eq.s32.totalorder %v948, %v962
    %vm1139 = vcmp.eq.s32.totalorder %v948, %v963
    %vm1140 = vcmp.eq.s32.totalorder %v948, %v964
    %vm1141 = vcmp.eq.s32.totalorder %v948, %v965
    %vm1142 = vcmp.eq.s32.totalorder %v948, %v966
    %vm1143 = vcmp.eq.s32.totalorder %v949, %v959
    %vm1144 = vcmp.eq.s32.totalorder %v949, %v960
    %vm1145 = vcmp.eq.s32.totalorder %v949, %v961
    %vm1146 = vcmp.eq.s32.totalorder %v949, %v962
    %vm1147 = vcmp.eq.s32.totalorder %v949, %v963
    %vm1148 = vcmp.eq.s32.totalorder %v949, %v964
    %vm1149 = vcmp.eq.s32.totalorder %v949, %v965
    %vm1150 = vcmp.eq.s32.totalorder %v949, %v966
    %vm1151 = vcmp.eq.s32.totalorder %v950, %v959
    %vm1152 = vcmp.eq.s32.totalorder %v950, %v960
    %vm1153 = vcmp.eq.s32.totalorder %v950, %v961
    %vm1154 = vcmp.eq.s32.totalorder %v950, %v962
    %vm1155 = vcmp.eq.s32.totalorder %v950, %v963
    %vm1156 = vcmp.eq.s32.totalorder %v950, %v964
    %vm1157 = vcmp.eq.s32.totalorder %v950, %v965
    %vm1158 = vcmp.eq.s32.totalorder %v950, %v966
    %v1159 = vand.u32 %v894, 7
    %v1160 = vand.u32 %v895, 7
    %v1161 = vand.u32 %v896, 7
    %v1162 = vand.u32 %v897, 7
    %v1163 = vand.u32 %v898, 7
    %v1164 = vand.u32 %v899, 7
    %v1165 = vand.u32 %v900, 7
    %v1166 = vand.u32 %v901, 7
    %v1167 = vand.u32 %v902, 7
    %v1168 = vand.u32 %v903, 7
    %v1169 = vand.u32 %v904, 7
    %v1170 = vand.u32 %v905, 7
    %v1171 = vand.u32 %v906, 7
    %v1172 = vand.u32 %v907, 7
    %v1173 = vand.u32 %v908, 7
    %v1174 = vand.u32 %v909, 7
    %v1175 = vand.u32 %v910, 7
    %v1176 = vand.u32 %v911, 7
    %v1177 = vand.u32 %v912, 7
    %v1178 = vand.u32 %v913, 7
    %v1179 = vand.u32 %v914, 7
    %v1180 = vand.u32 %v915, 7
    %v1181 = vand.u32 %v916, 7
    %v1182 = vand.u32 %v917, 7
    %v1183 = vshra.s32 %v919, 7
    %v1184 = vshra.s32 %v920, 7
    %v1185 = vshra.s32 %v921, 7
    %v1186 = vshra.s32 %v922, 7
    %v1187 = vshra.s32 %v923, 7
    %v1188 = vshra.s32 %v924, 7
    %v1189 = vshra.s32 %v925, 7
    %v1190 = vshra.s32 %v926, 7
    %vm1191 = vcmp.eq.s32.totalorder %v1159, %v1183
    %vm1192 = vcmp.eq.s32.totalorder %v1159, %v1184
    %vm1193 = vcmp.eq.s32.totalorder %v1159, %v1185
    %vm1194 = vcmp.eq.s32.totalorder %v1159, %v1186
    %vm1195 = vcmp.eq.s32.totalorder %v1159, %v1187
    %vm1196 = vcmp.eq.s32.totalorder %v1159, %v1188
    %vm1197 = vcmp.eq.s32.totalorder %v1159, %v1189
    %vm1198 = vcmp.eq.s32.totalorder %v1159, %v1190
    %vm1199 = vcmp.eq.s32.totalorder %v1160, %v1183
    %vm1200 = vcmp.eq.s32.totalorder %v1160, %v1184
    %vm1201 = vcmp.eq.s32.totalorder %v1160, %v1185
    %vm1202 = vcmp.eq.s32.totalorder %v1160, %v1186
    %vm1203 = vcmp.eq.s32.totalorder %v1160, %v1187
    %vm1204 = vcmp.eq.s32.totalorder %v1160, %v1188
    %vm1205 = vcmp.eq.s32.totalorder %v1160, %v1189
    %vm1206 = vcmp.eq.s32.totalorder %v1160, %v1190
    %vm1207 = vcmp.eq.s32.totalorder %v1161, %v1183
    %vm1208 = vcmp.eq.s32.totalorder %v1161, %v1184
    %vm1209 = vcmp.eq.s32.totalorder %v1161, %v1185
    %vm1210 = vcmp.eq.s32.totalorder %v1161, %v1186
    %vm1211 = vcmp.eq.s32.totalorder %v1161, %v1187
    %vm1212 = vcmp.eq.s32.totalorder %v1161, %v1188
    %vm1213 = vcmp.eq.s32.totalorder %v1161, %v1189
    %vm1214 = vcmp.eq.s32.totalorder %v1161, %v1190
    %vm1215 = vcmp.eq.s32.totalorder %v1162, %v1183
    %vm1216 = vcmp.eq.s32.totalorder %v1162, %v1184
    %vm1217 = vcmp.eq.s32.totalorder %v1162, %v1185
    %vm1218 = vcmp.eq.s32.totalorder %v1162, %v1186
    %vm1219 = vcmp.eq.s32.totalorder %v1162, %v1187
    %vm1220 = vcmp.eq.s32.totalorder %v1162, %v1188
    %vm1221 = vcmp.eq.s32.totalorder %v1162, %v1189
    %vm1222 = vcmp.eq.s32.totalorder %v1162, %v1190
    %vm1223 = vcmp.eq.s32.totalorder %v1163, %v1183
    %vm1224 = vcmp.eq.s32.totalorder %v1163, %v1184
    %vm1225 = vcmp.eq.s32.totalorder %v1163, %v1185
    %vm1226 = vcmp.eq.s32.totalorder %v1163, %v1186
    %vm1227 = vcmp.eq.s32.totalorder %v1163, %v1187
    %vm1228 = vcmp.eq.s32.totalorder %v1163, %v1188
    %vm1229 = vcmp.eq.s32.totalorder %v1163, %v1189
    %vm1230 = vcmp.eq.s32.totalorder %v1163, %v1190
    %vm1231 = vcmp.eq.s32.totalorder %v1164, %v1183
    %vm1232 = vcmp.eq.s32.totalorder %v1164, %v1184
    %vm1233 = vcmp.eq.s32.totalorder %v1164, %v1185
    %vm1234 = vcmp.eq.s32.totalorder %v1164, %v1186
    %vm1235 = vcmp.eq.s32.totalorder %v1164, %v1187
    %vm1236 = vcmp.eq.s32.totalorder %v1164, %v1188
    %vm1237 = vcmp.eq.s32.totalorder %v1164, %v1189
    %vm1238 = vcmp.eq.s32.totalorder %v1164, %v1190
    %vm1239 = vcmp.eq.s32.totalorder %v1165, %v1183
    %vm1240 = vcmp.eq.s32.totalorder %v1165, %v1184
    %vm1241 = vcmp.eq.s32.totalorder %v1165, %v1185
    %vm1242 = vcmp.eq.s32.totalorder %v1165, %v1186
    %vm1243 = vcmp.eq.s32.totalorder %v1165, %v1187
    %vm1244 = vcmp.eq.s32.totalorder %v1165, %v1188
    %vm1245 = vcmp.eq.s32.totalorder %v1165, %v1189
    %vm1246 = vcmp.eq.s32.totalorder %v1165, %v1190
    %vm1247 = vcmp.eq.s32.totalorder %v1166, %v1183
    %vm1248 = vcmp.eq.s32.totalorder %v1166, %v1184
    %vm1249 = vcmp.eq.s32.totalorder %v1166, %v1185
    %vm1250 = vcmp.eq.s32.totalorder %v1166, %v1186
    %vm1251 = vcmp.eq.s32.totalorder %v1166, %v1187
    %vm1252 = vcmp.eq.s32.totalorder %v1166, %v1188
    %vm1253 = vcmp.eq.s32.totalorder %v1166, %v1189
    %vm1254 = vcmp.eq.s32.totalorder %v1166, %v1190
    %vm1255 = vcmp.eq.s32.totalorder %v1167, %v1183
    %vm1256 = vcmp.eq.s32.totalorder %v1167, %v1184
    %vm1257 = vcmp.eq.s32.totalorder %v1167, %v1185
    %vm1258 = vcmp.eq.s32.totalorder %v1167, %v1186
    %vm1259 = vcmp.eq.s32.totalorder %v1167, %v1187
    %vm1260 = vcmp.eq.s32.totalorder %v1167, %v1188
    %vm1261 = vcmp.eq.s32.totalorder %v1167, %v1189
    %vm1262 = vcmp.eq.s32.totalorder %v1167, %v1190
    %vm1263 = vcmp.eq.s32.totalorder %v1168, %v1183
    %vm1264 = vcmp.eq.s32.totalorder %v1168, %v1184
    %vm1265 = vcmp.eq.s32.totalorder %v1168, %v1185
    %vm1266 = vcmp.eq.s32.totalorder %v1168, %v1186
    %vm1267 = vcmp.eq.s32.totalorder %v1168, %v1187
    %vm1268 = vcmp.eq.s32.totalorder %v1168, %v1188
    %vm1269 = vcmp.eq.s32.totalorder %v1168, %v1189
    %vm1270 = vcmp.eq.s32.totalorder %v1168, %v1190
    %vm1271 = vcmp.eq.s32.totalorder %v1169, %v1183
    %vm1272 = vcmp.eq.s32.totalorder %v1169, %v1184
    %vm1273 = vcmp.eq.s32.totalorder %v1169, %v1185
    %vm1274 = vcmp.eq.s32.totalorder %v1169, %v1186
    %vm1275 = vcmp.eq.s32.totalorder %v1169, %v1187
    %vm1276 = vcmp.eq.s32.totalorder %v1169, %v1188
    %vm1277 = vcmp.eq.s32.totalorder %v1169, %v1189
    %vm1278 = vcmp.eq.s32.totalorder %v1169, %v1190
    %vm1279 = vcmp.eq.s32.totalorder %v1170, %v1183
    %vm1280 = vcmp.eq.s32.totalorder %v1170, %v1184
    %vm1281 = vcmp.eq.s32.totalorder %v1170, %v1185
    %vm1282 = vcmp.eq.s32.totalorder %v1170, %v1186
    %vm1283 = vcmp.eq.s32.totalorder %v1170, %v1187
    %vm1284 = vcmp.eq.s32.totalorder %v1170, %v1188
    %vm1285 = vcmp.eq.s32.totalorder %v1170, %v1189
    %vm1286 = vcmp.eq.s32.totalorder %v1170, %v1190
    %vm1287 = vcmp.eq.s32.totalorder %v1171, %v1183
    %vm1288 = vcmp.eq.s32.totalorder %v1171, %v1184
    %vm1289 = vcmp.eq.s32.totalorder %v1171, %v1185
    %vm1290 = vcmp.eq.s32.totalorder %v1171, %v1186
    %vm1291 = vcmp.eq.s32.totalorder %v1171, %v1187
    %vm1292 = vcmp.eq.s32.totalorder %v1171, %v1188
    %vm1293 = vcmp.eq.s32.totalorder %v1171, %v1189
    %vm1294 = vcmp.eq.s32.totalorder %v1171, %v1190
    %vm1295 = vcmp.eq.s32.totalorder %v1172, %v1183
    %vm1296 = vcmp.eq.s32.totalorder %v1172, %v1184
    %vm1297 = vcmp.eq.s32.totalorder %v1172, %v1185
    %vm1298 = vcmp.eq.s32.totalorder %v1172, %v1186
    %vm1299 = vcmp.eq.s32.totalorder %v1172, %v1187
    %vm1300 = vcmp.eq.s32.totalorder %v1172, %v1188
    %vm1301 = vcmp.eq.s32.totalorder %v1172, %v1189
    %vm1302 = vcmp.eq.s32.totalorder %v1172, %v1190
    %vm1303 = vcmp.eq.s32.totalorder %v1173, %v1183
    %vm1304 = vcmp.eq.s32.totalorder %v1173, %v1184
    %vm1305 = vcmp.eq.s32.totalorder %v1173, %v1185
    %vm1306 = vcmp.eq.s32.totalorder %v1173, %v1186
    %vm1307 = vcmp.eq.s32.totalorder %v1173, %v1187
    %vm1308 = vcmp.eq.s32.totalorder %v1173, %v1188
    %vm1309 = vcmp.eq.s32.totalorder %v1173, %v1189
    %vm1310 = vcmp.eq.s32.totalorder %v1173, %v1190
    %vm1311 = vcmp.eq.s32.totalorder %v1174, %v1183
    %vm1312 = vcmp.eq.s32.totalorder %v1174, %v1184
    %vm1313 = vcmp.eq.s32.totalorder %v1174, %v1185
    %vm1314 = vcmp.eq.s32.totalorder %v1174, %v1186
    %vm1315 = vcmp.eq.s32.totalorder %v1174, %v1187
    %vm1316 = vcmp.eq.s32.totalorder %v1174, %v1188
    %vm1317 = vcmp.eq.s32.totalorder %v1174, %v1189
    %vm1318 = vcmp.eq.s32.totalorder %v1174, %v1190
    %vm1319 = vcmp.eq.s32.totalorder %v1175, %v1183
    %vm1320 = vcmp.eq.s32.totalorder %v1175, %v1184
    %vm1321 = vcmp.eq.s32.totalorder %v1175, %v1185
    %vm1322 = vcmp.eq.s32.totalorder %v1175, %v1186
    %vm1323 = vcmp.eq.s32.totalorder %v1175, %v1187
    %vm1324 = vcmp.eq.s32.totalorder %v1175, %v1188
    %vm1325 = vcmp.eq.s32.totalorder %v1175, %v1189
    %vm1326 = vcmp.eq.s32.totalorder %v1175, %v1190
    %vm1327 = vcmp.eq.s32.totalorder %v1176, %v1183
    %vm1328 = vcmp.eq.s32.totalorder %v1176, %v1184
    %vm1329 = vcmp.eq.s32.totalorder %v1176, %v1185
    %vm1330 = vcmp.eq.s32.totalorder %v1176, %v1186
    %vm1331 = vcmp.eq.s32.totalorder %v1176, %v1187
    %vm1332 = vcmp.eq.s32.totalorder %v1176, %v1188
    %vm1333 = vcmp.eq.s32.totalorder %v1176, %v1189
    %vm1334 = vcmp.eq.s32.totalorder %v1176, %v1190
    %vm1335 = vcmp.eq.s32.totalorder %v1177, %v1183
    %vm1336 = vcmp.eq.s32.totalorder %v1177, %v1184
    %vm1337 = vcmp.eq.s32.totalorder %v1177, %v1185
    %vm1338 = vcmp.eq.s32.totalorder %v1177, %v1186
    %vm1339 = vcmp.eq.s32.totalorder %v1177, %v1187
    %vm1340 = vcmp.eq.s32.totalorder %v1177, %v1188
    %vm1341 = vcmp.eq.s32.totalorder %v1177, %v1189
    %vm1342 = vcmp.eq.s32.totalorder %v1177, %v1190
    %vm1343 = vcmp.eq.s32.totalorder %v1178, %v1183
    %vm1344 = vcmp.eq.s32.totalorder %v1178, %v1184
    %vm1345 = vcmp.eq.s32.totalorder %v1178, %v1185
    %vm1346 = vcmp.eq.s32.totalorder %v1178, %v1186
    %vm1347 = vcmp.eq.s32.totalorder %v1178, %v1187
    %vm1348 = vcmp.eq.s32.totalorder %v1178, %v1188
    %vm1349 = vcmp.eq.s32.totalorder %v1178, %v1189
    %vm1350 = vcmp.eq.s32.totalorder %v1178, %v1190
    %vm1351 = vcmp.eq.s32.totalorder %v1179, %v1183
    %vm1352 = vcmp.eq.s32.totalorder %v1179, %v1184
    %vm1353 = vcmp.eq.s32.totalorder %v1179, %v1185
    %vm1354 = vcmp.eq.s32.totalorder %v1179, %v1186
    %vm1355 = vcmp.eq.s32.totalorder %v1179, %v1187
    %vm1356 = vcmp.eq.s32.totalorder %v1179, %v1188
    %vm1357 = vcmp.eq.s32.totalorder %v1179, %v1189
    %vm1358 = vcmp.eq.s32.totalorder %v1179, %v1190
    %vm1359 = vcmp.eq.s32.totalorder %v1180, %v1183
    %vm1360 = vcmp.eq.s32.totalorder %v1180, %v1184
    %vm1361 = vcmp.eq.s32.totalorder %v1180, %v1185
    %vm1362 = vcmp.eq.s32.totalorder %v1180, %v1186
    %vm1363 = vcmp.eq.s32.totalorder %v1180, %v1187
    %vm1364 = vcmp.eq.s32.totalorder %v1180, %v1188
    %vm1365 = vcmp.eq.s32.totalorder %v1180, %v1189
    %vm1366 = vcmp.eq.s32.totalorder %v1180, %v1190
    %vm1367 = vcmp.eq.s32.totalorder %v1181, %v1183
    %vm1368 = vcmp.eq.s32.totalorder %v1181, %v1184
    %vm1369 = vcmp.eq.s32.totalorder %v1181, %v1185
    %vm1370 = vcmp.eq.s32.totalorder %v1181, %v1186
    %vm1371 = vcmp.eq.s32.totalorder %v1181, %v1187
    %vm1372 = vcmp.eq.s32.totalorder %v1181, %v1188
    %vm1373 = vcmp.eq.s32.totalorder %v1181, %v1189
    %vm1374 = vcmp.eq.s32.totalorder %v1181, %v1190
    %vm1375 = vcmp.eq.s32.totalorder %v1182, %v1183
    %vm1376 = vcmp.eq.s32.totalorder %v1182, %v1184
    %vm1377 = vcmp.eq.s32.totalorder %v1182, %v1185
    %vm1378 = vcmp.eq.s32.totalorder %v1182, %v1186
    %vm1379 = vcmp.eq.s32.totalorder %v1182, %v1187
    %vm1380 = vcmp.eq.s32.totalorder %v1182, %v1188
    %vm1381 = vcmp.eq.s32.totalorder %v1182, %v1189
    %vm1382 = vcmp.eq.s32.totalorder %v1182, %v1190
    %vm1383 = vmand %vm967, %vm1191
    %vm1384 = vmand %vm968, %vm1192
    %vm1385 = vmand %vm969, %vm1193
    %vm1386 = vmand %vm970, %vm1194
    %vm1387 = vmand %vm971, %vm1195
    %vm1388 = vmand %vm972, %vm1196
    %vm1389 = vmand %vm973, %vm1197
    %vm1390 = vmand %vm974, %vm1198
    %vm1391 = vmand %vm975, %vm1199
    %vm1392 = vmand %vm976, %vm1200
    %vm1393 = vmand %vm977, %vm1201
    %vm1394 = vmand %vm978, %vm1202
    %vm1395 = vmand %vm979, %vm1203
    %vm1396 = vmand %vm980, %vm1204
    %vm1397 = vmand %vm981, %vm1205
    %vm1398 = vmand %vm982, %vm1206
    %vm1399 = vmand %vm983, %vm1207
    %vm1400 = vmand %vm984, %vm1208
    %vm1401 = vmand %vm985, %vm1209
    %vm1402 = vmand %vm986, %vm1210
    %vm1403 = vmand %vm987, %vm1211
    %vm1404 = vmand %vm988, %vm1212
    %vm1405 = vmand %vm989, %vm1213
    %vm1406 = vmand %vm990, %vm1214
    %vm1407 = vmand %vm991, %vm1215
    %vm1408 = vmand %vm992, %vm1216
    %vm1409 = vmand %vm993, %vm1217
    %vm1410 = vmand %vm994, %vm1218
    %vm1411 = vmand %vm995, %vm1219
    %vm1412 = vmand %vm996, %vm1220
    %vm1413 = vmand %vm997, %vm1221
    %vm1414 = vmand %vm998, %vm1222
    %vm1415 = vmand %vm999, %vm1223
    %vm1416 = vmand %vm1000, %vm1224
    %vm1417 = vmand %vm1001, %vm1225
    %vm1418 = vmand %vm1002, %vm1226
    %vm1419 = vmand %vm1003, %vm1227
    %vm1420 = vmand %vm1004, %vm1228
    %vm1421 = vmand %vm1005, %vm1229
    %vm1422 = vmand %vm1006, %vm1230
    %vm1423 = vmand %vm1007, %vm1231
    %vm1424 = vmand %vm1008, %vm1232
    %vm1425 = vmand %vm1009, %vm1233
    %vm1426 = vmand %vm1010, %vm1234
    %vm1427 = vmand %vm1011, %vm1235
    %vm1428 = vmand %vm1012, %vm1236
    %vm1429 = vmand %vm1013, %vm1237
    %vm1430 = vmand %vm1014, %vm1238
    %vm1431 = vmand %vm1015, %vm1239
    %vm1432 = vmand %vm1016, %vm1240
    %vm1433 = vmand %vm1017, %vm1241
    %vm1434 = vmand %vm1018, %vm1242
    %vm1435 = vmand %vm1019, %vm1243
    %vm1436 = vmand %vm1020, %vm1244
    %vm1437 = vmand %vm1021, %vm1245
    %vm1438 = vmand %vm1022, %vm1246
    %vm1439 = vmand %vm1023, %vm1247
    %vm1440 = vmand %vm1024, %vm1248
    %vm1441 = vmand %vm1025, %vm1249
    %vm1442 = vmand %vm1026, %vm1250
    %vm1443 = vmand %vm1027, %vm1251
    %vm1444 = vmand %vm1028, %vm1252
    %vm1445 = vmand %vm1029, %vm1253
    %vm1446 = vmand %vm1030, %vm1254
    %vm1447 = vmand %vm1031, %vm1255
    %vm1448 = vmand %vm1032, %vm1256
    %vm1449 = vmand %vm1033, %vm1257
    %vm1450 = vmand %vm1034, %vm1258
    %vm1451 = vmand %vm1035, %vm1259
    %vm1452 = vmand %vm1036, %vm1260
    %vm1453 = vmand %vm1037, %vm1261
    %vm1454 = vmand %vm1038, %vm1262
    %vm1455 = vmand %vm1039, %vm1263
    %vm1456 = vmand %vm1040, %vm1264
    %vm1457 = vmand %vm1041, %vm1265
    %vm1458 = vmand %vm1042, %vm1266
    %vm1459 = vmand %vm1043, %vm1267
    %vm1460 = vmand %vm1044, %vm1268
    %vm1461 = vmand %vm1045, %vm1269
    %vm1462 = vmand %vm1046, %vm1270
    %vm1463 = vmand %vm1047, %vm1271
    %vm1464 = vmand %vm1048, %vm1272
    %vm1465 = vmand %vm1049, %vm1273
    %vm1466 = vmand %vm1050, %vm1274
    %vm1467 = vmand %vm1051, %vm1275
    %vm1468 = vmand %vm1052, %vm1276
    %vm1469 = vmand %vm1053, %vm1277
    %vm1470 = vmand %vm1054, %vm1278
    %vm1471 = vmand %vm1055, %vm1279
    %vm1472 = vmand %vm1056, %vm1280
    %vm1473 = vmand %vm1057, %vm1281
    %vm1474 = vmand %vm1058, %vm1282
    %vm1475 = vmand %vm1059, %vm1283
    %vm1476 = vmand %vm1060, %vm1284
    %vm1477 = vmand %vm1061, %vm1285
    %vm1478 = vmand %vm1062, %vm1286
    %vm1479 = vmand %vm1063, %vm1287
    %vm1480 = vmand %vm1064, %vm1288
    %vm1481 = vmand %vm1065, %vm1289
    %vm1482 = vmand %vm1066, %vm1290
    %vm1483 = vmand %vm1067, %vm1291
    %vm1484 = vmand %vm1068, %vm1292
    %vm1485 = vmand %vm1069, %vm1293
    %vm1486 = vmand %vm1070, %vm1294
    %vm1487 = vmand %vm1071, %vm1295
    %vm1488 = vmand %vm1072, %vm1296
    %vm1489 = vmand %vm1073, %vm1297
    %vm1490 = vmand %vm1074, %vm1298
    %vm1491 = vmand %vm1075, %vm1299
    %vm1492 = vmand %vm1076, %vm1300
    %vm1493 = vmand %vm1077, %vm1301
    %vm1494 = vmand %vm1078, %vm1302
    %vm1495 = vmand %vm1079, %vm1303
    %vm1496 = vmand %vm1080, %vm1304
    %vm1497 = vmand %vm1081, %vm1305
    %vm1498 = vmand %vm1082, %vm1306
    %vm1499 = vmand %vm1083, %vm1307
    %vm1500 = vmand %vm1084, %vm1308
    %vm1501 = vmand %vm1085, %vm1309
    %vm1502 = vmand %vm1086, %vm1310
    %vm1503 = vmand %vm1087, %vm1311
    %vm1504 = vmand %vm1088, %vm1312
    %vm1505 = vmand %vm1089, %vm1313
    %vm1506 = vmand %vm1090, %vm1314
    %vm1507 = vmand %vm1091, %vm1315
    %vm1508 = vmand %vm1092, %vm1316
    %vm1509 = vmand %vm1093, %vm1317
    %vm1510 = vmand %vm1094, %vm1318
    %vm1511 = vmand %vm1095, %vm1319
    %vm1512 = vmand %vm1096, %vm1320
    %vm1513 = vmand %vm1097, %vm1321
    %vm1514 = vmand %vm1098, %vm1322
    %vm1515 = vmand %vm1099, %vm1323
    %vm1516 = vmand %vm1100, %vm1324
    %vm1517 = vmand %vm1101, %vm1325
    %vm1518 = vmand %vm1102, %vm1326
    %vm1519 = vmand %vm1103, %vm1327
    %vm1520 = vmand %vm1104, %vm1328
    %vm1521 = vmand %vm1105, %vm1329
    %vm1522 = vmand %vm1106, %vm1330
    %vm1523 = vmand %vm1107, %vm1331
    %vm1524 = vmand %vm1108, %vm1332
    %vm1525 = vmand %vm1109, %vm1333
    %vm1526 = vmand %vm1110, %vm1334
    %vm1527 = vmand %vm1111, %vm1335
    %vm1528 = vmand %vm1112, %vm1336
    %vm1529 = vmand %vm1113, %vm1337
    %vm1530 = vmand %vm1114, %vm1338
    %vm1531 = vmand %vm1115, %vm1339
    %vm1532 = vmand %vm1116, %vm1340
    %vm1533 = vmand %vm1117, %vm1341
    %vm1534 = vmand %vm1118, %vm1342
    %vm1535 = vmand %vm1119, %vm1343
    %vm1536 = vmand %vm1120, %vm1344
    %vm1537 = vmand %vm1121, %vm1345
    %vm1538 = vmand %vm1122, %vm1346
    %vm1539 = vmand %vm1123, %vm1347
    %vm1540 = vmand %vm1124, %vm1348
    %vm1541 = vmand %vm1125, %vm1349
    %vm1542 = vmand %vm1126, %vm1350
    %vm1543 = vmand %vm1127, %vm1351
    %vm1544 = vmand %vm1128, %vm1352
    %vm1545 = vmand %vm1129, %vm1353
    %vm1546 = vmand %vm1130, %vm1354
    %vm1547 = vmand %vm1131, %vm1355
    %vm1548 = vmand %vm1132, %vm1356
    %vm1549 = vmand %vm1133, %vm1357
    %vm1550 = vmand %vm1134, %vm1358
    %vm1551 = vmand %vm1135, %vm1359
    %vm1552 = vmand %vm1136, %vm1360
    %vm1553 = vmand %vm1137, %vm1361
    %vm1554 = vmand %vm1138, %vm1362
    %vm1555 = vmand %vm1139, %vm1363
    %vm1556 = vmand %vm1140, %vm1364
    %vm1557 = vmand %vm1141, %vm1365
    %vm1558 = vmand %vm1142, %vm1366
    %vm1559 = vmand %vm1143, %vm1367
    %vm1560 = vmand %vm1144, %vm1368
    %vm1561 = vmand %vm1145, %vm1369
    %vm1562 = vmand %vm1146, %vm1370
    %vm1563 = vmand %vm1147, %vm1371
    %vm1564 = vmand %vm1148, %vm1372
    %vm1565 = vmand %vm1149, %vm1373
    %vm1566 = vmand %vm1150, %vm1374
    %vm1567 = vmand %vm1151, %vm1375
    %vm1568 = vmand %vm1152, %vm1376
    %vm1569 = vmand %vm1153, %vm1377
    %vm1570 = vmand %vm1154, %vm1378
    %vm1571 = vmand %vm1155, %vm1379
    %vm1572 = vmand %vm1156, %vm1380
    %vm1573 = vmand %vm1157, %vm1381
    %vm1574 = vmand %vm1158, %vm1382
    %v1575 = vsel %vm1383, 1.0, 0.0
    %v1576 = vsel %vm1384, 1.0, 0.0
    %v1577 = vsel %vm1385, 1.0, 0.0
    %v1578 = vsel %vm1386, 1.0, 0.0
    %v1579 = vsel %vm1387, 1.0, 0.0
    %v1580 = vsel %vm1388, 1.0, 0.0
    %v1581 = vsel %vm1389, 1.0, 0.0
    %v1582 = vsel %vm1390, 1.0, 0.0
    %v1583 = vsel %vm1391, 1.0, 0.0
    %v1584 = vsel %vm1392, 1.0, 0.0
    %v1585 = vsel %vm1393, 1.0, 0.0
    %v1586 = vsel %vm1394, 1.0, 0.0
    %v1587 = vsel %vm1395, 1.0, 0.0
    %v1588 = vsel %vm1396, 1.0, 0.0
    %v1589 = vsel %vm1397, 1.0, 0.0
    %v1590 = vsel %vm1398, 1.0, 0.0
    %v1591 = vsel %vm1399, 1.0, 0.0
    %v1592 = vsel %vm1400, 1.0, 0.0
    %v1593 = vsel %vm1401, 1.0, 0.0
    %v1594 = vsel %vm1402, 1.0, 0.0
    %v1595 = vsel %vm1403, 1.0, 0.0
    %v1596 = vsel %vm1404, 1.0, 0.0
    %v1597 = vsel %vm1405, 1.0, 0.0
    %v1598 = vsel %vm1406, 1.0, 0.0
    %v1599 = vsel %vm1407, 1.0, 0.0
    %v1600 = vsel %vm1408, 1.0, 0.0
    %v1601 = vsel %vm1409, 1.0, 0.0
    %v1602 = vsel %vm1410, 1.0, 0.0
    %v1603 = vsel %vm1411, 1.0, 0.0
    %v1604 = vsel %vm1412, 1.0, 0.0
    %v1605 = vsel %vm1413, 1.0, 0.0
    %v1606 = vsel %vm1414, 1.0, 0.0
    %v1607 = vsel %vm1415, 1.0, 0.0
    %v1608 = vsel %vm1416, 1.0, 0.0
    %v1609 = vsel %vm1417, 1.0, 0.0
    %v1610 = vsel %vm1418, 1.0, 0.0
    %v1611 = vsel %vm1419, 1.0, 0.0
    %v1612 = vsel %vm1420, 1.0, 0.0
    %v1613 = vsel %vm1421, 1.0, 0.0
    %v1614 = vsel %vm1422, 1.0, 0.0
    %v1615 = vsel %vm1423, 1.0, 0.0
    %v1616 = vsel %vm1424, 1.0, 0.0
    %v1617 = vsel %vm1425, 1.0, 0.0
    %v1618 = vsel %vm1426, 1.0, 0.0
    %v1619 = vsel %vm1427, 1.0, 0.0
    %v1620 = vsel %vm1428, 1.0, 0.0
    %v1621 = vsel %vm1429, 1.0, 0.0
    %v1622 = vsel %vm1430, 1.0, 0.0
    %v1623 = vsel %vm1431, 1.0, 0.0
    %v1624 = vsel %vm1432, 1.0, 0.0
    %v1625 = vsel %vm1433, 1.0, 0.0
    %v1626 = vsel %vm1434, 1.0, 0.0
    %v1627 = vsel %vm1435, 1.0, 0.0
    %v1628 = vsel %vm1436, 1.0, 0.0
    %v1629 = vsel %vm1437, 1.0, 0.0
    %v1630 = vsel %vm1438, 1.0, 0.0
    %v1631 = vsel %vm1439, 1.0, 0.0
    %v1632 = vsel %vm1440, 1.0, 0.0
    %v1633 = vsel %vm1441, 1.0, 0.0
    %v1634 = vsel %vm1442, 1.0, 0.0
    %v1635 = vsel %vm1443, 1.0, 0.0
    %v1636 = vsel %vm1444, 1.0, 0.0
    %v1637 = vsel %vm1445, 1.0, 0.0
    %v1638 = vsel %vm1446, 1.0, 0.0
    %v1639 = vsel %vm1447, 1.0, 0.0
    %v1640 = vsel %vm1448, 1.0, 0.0
    %v1641 = vsel %vm1449, 1.0, 0.0
    %v1642 = vsel %vm1450, 1.0, 0.0
    %v1643 = vsel %vm1451, 1.0, 0.0
    %v1644 = vsel %vm1452, 1.0, 0.0
    %v1645 = vsel %vm1453, 1.0, 0.0
    %v1646 = vsel %vm1454, 1.0, 0.0
    %v1647 = vsel %vm1455, 1.0, 0.0
    %v1648 = vsel %vm1456, 1.0, 0.0
    %v1649 = vsel %vm1457, 1.0, 0.0
    %v1650 = vsel %vm1458, 1.0, 0.0
    %v1651 = vsel %vm1459, 1.0, 0.0
    %v1652 = vsel %vm1460, 1.0, 0.0
    %v1653 = vsel %vm1461, 1.0, 0.0
    %v1654 = vsel %vm1462, 1.0, 0.0
    %v1655 = vsel %vm1463, 1.0, 0.0
    %v1656 = vsel %vm1464, 1.0, 0.0
    %v1657 = vsel %vm1465, 1.0, 0.0
    %v1658 = vsel %vm1466, 1.0, 0.0
    %v1659 = vsel %vm1467, 1.0, 0.0
    %v1660 = vsel %vm1468, 1.0, 0.0
    %v1661 = vsel %vm1469, 1.0, 0.0
    %v1662 = vsel %vm1470, 1.0, 0.0
    %v1663 = vsel %vm1471, 1.0, 0.0
    %v1664 = vsel %vm1472, 1.0, 0.0
    %v1665 = vsel %vm1473, 1.0, 0.0
    %v1666 = vsel %vm1474, 1.0, 0.0
    %v1667 = vsel %vm1475, 1.0, 0.0
    %v1668 = vsel %vm1476, 1.0, 0.0
    %v1669 = vsel %vm1477, 1.0, 0.0
    %v1670 = vsel %vm1478, 1.0, 0.0
    %v1671 = vsel %vm1479, 1.0, 0.0
    %v1672 = vsel %vm1480, 1.0, 0.0
    %v1673 = vsel %vm1481, 1.0, 0.0
    %v1674 = vsel %vm1482, 1.0, 0.0
    %v1675 = vsel %vm1483, 1.0, 0.0
    %v1676 = vsel %vm1484, 1.0, 0.0
    %v1677 = vsel %vm1485, 1.0, 0.0
    %v1678 = vsel %vm1486, 1.0, 0.0
    %v1679 = vsel %vm1487, 1.0, 0.0
    %v1680 = vsel %vm1488, 1.0, 0.0
    %v1681 = vsel %vm1489, 1.0, 0.0
    %v1682 = vsel %vm1490, 1.0, 0.0
    %v1683 = vsel %vm1491, 1.0, 0.0
    %v1684 = vsel %vm1492, 1.0, 0.0
    %v1685 = vsel %vm1493, 1.0, 0.0
    %v1686 = vsel %vm1494, 1.0, 0.0
    %v1687 = vsel %vm1495, 1.0, 0.0
    %v1688 = vsel %vm1496, 1.0, 0.0
    %v1689 = vsel %vm1497, 1.0, 0.0
    %v1690 = vsel %vm1498, 1.0, 0.0
    %v1691 = vsel %vm1499, 1.0, 0.0
    %v1692 = vsel %vm1500, 1.0, 0.0
    %v1693 = vsel %vm1501, 1.0, 0.0
    %v1694 = vsel %vm1502, 1.0, 0.0
    %v1695 = vsel %vm1503, 1.0, 0.0
    %v1696 = vsel %vm1504, 1.0, 0.0
    %v1697 = vsel %vm1505, 1.0, 0.0
    %v1698 = vsel %vm1506, 1.0, 0.0
    %v1699 = vsel %vm1507, 1.0, 0.0
    %v1700 = vsel %vm1508, 1.0, 0.0
    %v1701 = vsel %vm1509, 1.0, 0.0
    %v1702 = vsel %vm1510, 1.0, 0.0
    %v1703 = vsel %vm1511, 1.0, 0.0
    %v1704 = vsel %vm1512, 1.0, 0.0
    %v1705 = vsel %vm1513, 1.0, 0.0
    %v1706 = vsel %vm1514, 1.0, 0.0
    %v1707 = vsel %vm1515, 1.0, 0.0
    %v1708 = vsel %vm1516, 1.0, 0.0
    %v1709 = vsel %vm1517, 1.0, 0.0
    %v1710 = vsel %vm1518, 1.0, 0.0
    %v1711 = vsel %vm1519, 1.0, 0.0
    %v1712 = vsel %vm1520, 1.0, 0.0
    %v1713 = vsel %vm1521, 1.0, 0.0
    %v1714 = vsel %vm1522, 1.0, 0.0
    %v1715 = vsel %vm1523, 1.0, 0.0
    %v1716 = vsel %vm1524, 1.0, 0.0
    %v1717 = vsel %vm1525, 1.0, 0.0
    %v1718 = vsel %vm1526, 1.0, 0.0
    %v1719 = vsel %vm1527, 1.0, 0.0
    %v1720 = vsel %vm1528, 1.0, 0.0
    %v1721 = vsel %vm1529, 1.0, 0.0
    %v1722 = vsel %vm1530, 1.0, 0.0
    %v1723 = vsel %vm1531, 1.0, 0.0
    %v1724 = vsel %vm1532, 1.0, 0.0
    %v1725 = vsel %vm1533, 1.0, 0.0
    %v1726 = vsel %vm1534, 1.0, 0.0
    %v1727 = vsel %vm1535, 1.0, 0.0
    %v1728 = vsel %vm1536, 1.0, 0.0
    %v1729 = vsel %vm1537, 1.0, 0.0
    %v1730 = vsel %vm1538, 1.0, 0.0
    %v1731 = vsel %vm1539, 1.0, 0.0
    %v1732 = vsel %vm1540, 1.0, 0.0
    %v1733 = vsel %vm1541, 1.0, 0.0
    %v1734 = vsel %vm1542, 1.0, 0.0
    %v1735 = vsel %vm1543, 1.0, 0.0
    %v1736 = vsel %vm1544, 1.0, 0.0
    %v1737 = vsel %vm1545, 1.0, 0.0
    %v1738 = vsel %vm1546, 1.0, 0.0
    %v1739 = vsel %vm1547, 1.0, 0.0
    %v1740 = vsel %vm1548, 1.0, 0.0
    %v1741 = vsel %vm1549, 1.0, 0.0
    %v1742 = vsel %vm1550, 1.0, 0.0
    %v1743 = vsel %vm1551, 1.0, 0.0
    %v1744 = vsel %vm1552, 1.0, 0.0
    %v1745 = vsel %vm1553, 1.0, 0.0
    %v1746 = vsel %vm1554, 1.0, 0.0
    %v1747 = vsel %vm1555, 1.0, 0.0
    %v1748 = vsel %vm1556, 1.0, 0.0
    %v1749 = vsel %vm1557, 1.0, 0.0
    %v1750 = vsel %vm1558, 1.0, 0.0
    %v1751 = vsel %vm1559, 1.0, 0.0
    %v1752 = vsel %vm1560, 1.0, 0.0
    %v1753 = vsel %vm1561, 1.0, 0.0
    %v1754 = vsel %vm1562, 1.0, 0.0
    %v1755 = vsel %vm1563, 1.0, 0.0
    %v1756 = vsel %vm1564, 1.0, 0.0
    %v1757 = vsel %vm1565, 1.0, 0.0
    %v1758 = vsel %vm1566, 1.0, 0.0
    %v1759 = vsel %vm1567, 1.0, 0.0
    %v1760 = vsel %vm1568, 1.0, 0.0
    %v1761 = vsel %vm1569, 1.0, 0.0
    %v1762 = vsel %vm1570, 1.0, 0.0
    %v1763 = vsel %vm1571, 1.0, 0.0
    %v1764 = vsel %vm1572, 1.0, 0.0
    %v1765 = vsel %vm1573, 1.0, 0.0
    %v1766 = vsel %vm1574, 1.0, 0.0
    %v1768 = vsel %vm872, %v888, 0
    %v1771 = vsel %vm872, %v892, 0
    %1773 = vmatprep.subr.mxu0 %v1576
    %1774 = vmatpush1.msra.mxu0 %v1575
    %1775 = vmatprep.subr.mxu0 %v1584
    %1776 = vmatpush1.msra.mxu0 %v1583
    %1777 = vmatprep.subr.mxu0 %v1592
    %1778 = vmatpush1.msra.mxu0 %v1591
    %1779 = vmatprep.subr.mxu0 %v1600
    %1780 = vmatpush1.msra.mxu0 %v1599
    %1781 = vmatprep.subr.mxu0 %v1608
    %1782 = vmatpush1.msra.mxu0 %v1607
    %1783 = vmatprep.subr.mxu0 %v1616
    %1784 = vmatpush1.msra.mxu0 %v1615
    %1785 = vmatprep.subr.mxu0 %v1624
    %1786 = vmatpush1.msra.mxu0 %v1623
    %1787 = vmatprep.subr.mxu0 %v1632
    %1788 = vmatpush1.msra.mxu0 %v1631
    %1789 = vmatprep.subr.mxu0 %v1640
    %1790 = vmatpush1.msra.mxu0 %v1639
    %1791 = vmatprep.subr.mxu0 %v1648
    %1792 = vmatpush1.msra.mxu0 %v1647
    %1793 = vmatprep.subr.mxu0 %v1656
    %1794 = vmatpush1.msra.mxu0 %v1655
    %1795 = vmatprep.subr.mxu0 %v1664
    %1796 = vmatpush1.msra.mxu0 %v1663
    %1797 = vmatprep.subr.mxu0 %v1672
    %1798 = vmatpush1.msra.mxu0 %v1671
    %1799 = vmatprep.subr.mxu0 %v1680
    %1800 = vmatpush1.msra.mxu0 %v1679
    %1801 = vmatprep.subr.mxu0 %v1688
    %1802 = vmatpush1.msra.mxu0 %v1687
    %1803 = vmatprep.subr.mxu0 %v1696
    %1804 = vmatpush1.msra.mxu0 %v1695
    %1805 = vmatprep.subr.mxu0 %v1704
    %1806 = vmatpush1.msra.mxu0 %v1703
    %1807 = vmatprep.subr.mxu0 %v1712
    %1808 = vmatpush1.msra.mxu0 %v1711
    %1809 = vmatprep.subr.mxu0 %v1720
    %1810 = vmatpush1.msra.mxu0 %v1719
    %1811 = vmatprep.subr.mxu0 %v1728
    %1812 = vmatpush1.msra.mxu0 %v1727
    %1813 = vmatprep.subr.mxu0 %v1736
    %1814 = vmatpush1.msra.mxu0 %v1735
    %1815 = vmatprep.subr.mxu0 %v1744
    %1816 = vmatpush1.msra.mxu0 %v1743
    %1817 = vmatprep.subr.mxu0 %v1752
    %1818 = vmatpush1.msra.mxu0 %v1751
    %1819 = vmatprep.subr.mxu0 %v1760
    %1820 = vmatpush1.msra.mxu0 %v1759
    %1821 = vmatprep.subr.mxu0 0.0
    %1822 = vmatpush1.msra.mxu0 0.0
    %1823 = vmatprep.subr.mxu0 0.0
    %1824 = vmatpush1.msra.mxu0 0.0
    %1825 = vmatprep.subr.mxu0 0.0
    %1826 = vmatpush1.msra.mxu0 0.0
    %1827 = vmatprep.subr.mxu0 0.0
    %1828 = vmatpush1.msra.mxu0 0.0
    %1829 = vmatprep.subr.mxu0 0.0
    %1830 = vmatpush1.msra.mxu0 0.0
    %1831 = vmatprep.subr.mxu0 0.0
    %1832 = vmatpush1.msra.mxu0 0.0
    %1833 = vmatprep.subr.mxu0 0.0
    %1834 = vmatpush1.msra.mxu0 0.0
    %1835 = vmatprep.subr.mxu0 0.0
    %1836 = vmatpush1.msra.mxu0 0.0
    %1837 = vmatprep.mubr.f32.mxu0 %v1768
    %1838 = vmatmul.mubr.f32.gmra.mrb[0].mxu0 %v886
    %v1839 = vpop.f32.mrb[0].mxu0
    %v1840 = vadd.f32 0.0, %v1839
    %v1841 = vpop.f32.mrb[0].mxu0
    %v1842 = vadd.f32 0.0, %v1841
    %1843 = vmatprep.mubr.f32.mxu0 %v1771
    %1844 = vmatmul.mubr.f32.gmra.mrb[0].mxu0 %v890
    %v1845 = vpop.f32.mrb[0].mxu0
    %v1846 = vadd.f32 0.0, %v1845
    %v1847 = vpop.f32.mrb[0].mxu0
    %v1848 = vadd.f32 0.0, %v1847
    %1849 = vdwg.mxu0
    %1850 = vmatprep.subr.mxu0 %v1578
    %1851 = vmatpush1.msra.mxu0 %v1577
    %1852 = vmatprep.subr.mxu0 %v1586
    %1853 = vmatpush1.msra.mxu0 %v1585
    %1854 = vmatprep.subr.mxu0 %v1594
    %1855 = vmatpush1.msra.mxu0 %v1593
    %1856 = vmatprep.subr.mxu0 %v1602
    %1857 = vmatpush1.msra.mxu0 %v1601
    %1858 = vmatprep.subr.mxu0 %v1610
    %1859 = vmatpush1.msra.mxu0 %v1609
    %1860 = vmatprep.subr.mxu0 %v1618
    %1861 = vmatpush1.msra.mxu0 %v1617
    %1862 = vmatprep.subr.mxu0 %v1626
    %1863 = vmatpush1.msra.mxu0 %v1625
    %1864 = vmatprep.subr.mxu0 %v1634
    %1865 = vmatpush1.msra.mxu0 %v1633
    %1866 = vmatprep.subr.mxu0 %v1642
    %1867 = vmatpush1.msra.mxu0 %v1641
    %1868 = vmatprep.subr.mxu0 %v1650
    %1869 = vmatpush1.msra.mxu0 %v1649
    %1870 = vmatprep.subr.mxu0 %v1658
    %1871 = vmatpush1.msra.mxu0 %v1657
    %1872 = vmatprep.subr.mxu0 %v1666
    %1873 = vmatpush1.msra.mxu0 %v1665
    %1874 = vmatprep.subr.mxu0 %v1674
    %1875 = vmatpush1.msra.mxu0 %v1673
    %1876 = vmatprep.subr.mxu0 %v1682
    %1877 = vmatpush1.msra.mxu0 %v1681
    %1878 = vmatprep.subr.mxu0 %v1690
    %1879 = vmatpush1.msra.mxu0 %v1689
    %1880 = vmatprep.subr.mxu0 %v1698
    %1881 = vmatpush1.msra.mxu0 %v1697
    %1882 = vmatprep.subr.mxu0 %v1706
    %1883 = vmatpush1.msra.mxu0 %v1705
    %1884 = vmatprep.subr.mxu0 %v1714
    %1885 = vmatpush1.msra.mxu0 %v1713
    %1886 = vmatprep.subr.mxu0 %v1722
    %1887 = vmatpush1.msra.mxu0 %v1721
    %1888 = vmatprep.subr.mxu0 %v1730
    %1889 = vmatpush1.msra.mxu0 %v1729
    %1890 = vmatprep.subr.mxu0 %v1738
    %1891 = vmatpush1.msra.mxu0 %v1737
    %1892 = vmatprep.subr.mxu0 %v1746
    %1893 = vmatpush1.msra.mxu0 %v1745
    %1894 = vmatprep.subr.mxu0 %v1754
    %1895 = vmatpush1.msra.mxu0 %v1753
    %1896 = vmatprep.subr.mxu0 %v1762
    %1897 = vmatpush1.msra.mxu0 %v1761
    %1898 = vmatprep.subr.mxu0 0.0
    %1899 = vmatpush1.msra.mxu0 0.0
    %1900 = vmatprep.subr.mxu0 0.0
    %1901 = vmatpush1.msra.mxu0 0.0
    %1902 = vmatprep.subr.mxu0 0.0
    %1903 = vmatpush1.msra.mxu0 0.0
    %1904 = vmatprep.subr.mxu0 0.0
    %1905 = vmatpush1.msra.mxu0 0.0
    %1906 = vmatprep.subr.mxu0 0.0
    %1907 = vmatpush1.msra.mxu0 0.0
    %1908 = vmatprep.subr.mxu0 0.0
    %1909 = vmatpush1.msra.mxu0 0.0
    %1910 = vmatprep.subr.mxu0 0.0
    %1911 = vmatpush1.msra.mxu0 0.0
    %1912 = vmatprep.subr.mxu0 0.0
    %1913 = vmatpush1.msra.mxu0 0.0
    %1914 = vmatprep.mubr.f32.mxu0 %v1768
    %1915 = vmatmul.mubr.f32.gmra.mrb[0].mxu0 %v886
    %v1916 = vpop.f32.mrb[0].mxu0
    %v1917 = vadd.f32 0.0, %v1916
    %v1918 = vpop.f32.mrb[0].mxu0
    %v1919 = vadd.f32 0.0, %v1918
    %1920 = vmatprep.mubr.f32.mxu0 %v1771
    %1921 = vmatmul.mubr.f32.gmra.mrb[0].mxu0 %v890
    %v1922 = vpop.f32.mrb[0].mxu0
    %v1923 = vadd.f32 0.0, %v1922
    %v1924 = vpop.f32.mrb[0].mxu0
    %v1925 = vadd.f32 0.0, %v1924
    %1926 = vdwg.mxu0
    %1927 = vmatprep.subr.mxu0 %v1580
    %1928 = vmatpush1.msra.mxu0 %v1579
    %1929 = vmatprep.subr.mxu0 %v1588
    %1930 = vmatpush1.msra.mxu0 %v1587
    %1931 = vmatprep.subr.mxu0 %v1596
    %1932 = vmatpush1.msra.mxu0 %v1595
    %1933 = vmatprep.subr.mxu0 %v1604
    %1934 = vmatpush1.msra.mxu0 %v1603
    %1935 = vmatprep.subr.mxu0 %v1612
    %1936 = vmatpush1.msra.mxu0 %v1611
    %1937 = vmatprep.subr.mxu0 %v1620
    %1938 = vmatpush1.msra.mxu0 %v1619
    %1939 = vmatprep.subr.mxu0 %v1628
    %1940 = vmatpush1.msra.mxu0 %v1627
    %1941 = vmatprep.subr.mxu0 %v1636
    %1942 = vmatpush1.msra.mxu0 %v1635
    %1943 = vmatprep.subr.mxu0 %v1644
    %1944 = vmatpush1.msra.mxu0 %v1643
    %1945 = vmatprep.subr.mxu0 %v1652
    %1946 = vmatpush1.msra.mxu0 %v1651
    %1947 = vmatprep.subr.mxu0 %v1660
    %1948 = vmatpush1.msra.mxu0 %v1659
    %1949 = vmatprep.subr.mxu0 %v1668
    %1950 = vmatpush1.msra.mxu0 %v1667
    %1951 = vmatprep.subr.mxu0 %v1676
    %1952 = vmatpush1.msra.mxu0 %v1675
    %1953 = vmatprep.subr.mxu0 %v1684
    %1954 = vmatpush1.msra.mxu0 %v1683
    %1955 = vmatprep.subr.mxu0 %v1692
    %1956 = vmatpush1.msra.mxu0 %v1691
    %1957 = vmatprep.subr.mxu0 %v1700
    %1958 = vmatpush1.msra.mxu0 %v1699
    %1959 = vmatprep.subr.mxu0 %v1708
    %1960 = vmatpush1.msra.mxu0 %v1707
    %1961 = vmatprep.subr.mxu0 %v1716
    %1962 = vmatpush1.msra.mxu0 %v1715
    %1963 = vmatprep.subr.mxu0 %v1724
    %1964 = vmatpush1.msra.mxu0 %v1723
    %1965 = vmatprep.subr.mxu0 %v1732
    %1966 = vmatpush1.msra.mxu0 %v1731
    %1967 = vmatprep.subr.mxu0 %v1740
    %1968 = vmatpush1.msra.mxu0 %v1739
    %1969 = vmatprep.subr.mxu0 %v1748
    %1970 = vmatpush1.msra.mxu0 %v1747
    %1971 = vmatprep.subr.mxu0 %v1756
    %1972 = vmatpush1.msra.mxu0 %v1755
    %1973 = vmatprep.subr.mxu0 %v1764
    %1974 = vmatpush1.msra.mxu0 %v1763
    %1975 = vmatprep.subr.mxu0 0.0
    %1976 = vmatpush1.msra.mxu0 0.0
    %1977 = vmatprep.subr.mxu0 0.0
    %1978 = vmatpush1.msra.mxu0 0.0
    %1979 = vmatprep.subr.mxu0 0.0
    %1980 = vmatpush1.msra.mxu0 0.0
    %1981 = vmatprep.subr.mxu0 0.0
    %1982 = vmatpush1.msra.mxu0 0.0
    %1983 = vmatprep.subr.mxu0 0.0
    %1984 = vmatpush1.msra.mxu0 0.0
    %1985 = vmatprep.subr.mxu0 0.0
    %1986 = vmatpush1.msra.mxu0 0.0
    %1987 = vmatprep.subr.mxu0 0.0
    %1988 = vmatpush1.msra.mxu0 0.0
    %1989 = vmatprep.subr.mxu0 0.0
    %1990 = vmatpush1.msra.mxu0 0.0
    %1991 = vmatprep.mubr.f32.mxu0 %v1768
    %1992 = vmatmul.mubr.f32.gmra.mrb[0].mxu0 %v886
    %v1993 = vpop.f32.mrb[0].mxu0
    %v1994 = vadd.f32 0.0, %v1993
    %v1995 = vpop.f32.mrb[0].mxu0
    %v1996 = vadd.f32 0.0, %v1995
    %1997 = vmatprep.mubr.f32.mxu0 %v1771
    %1998 = vmatmul.mubr.f32.gmra.mrb[0].mxu0 %v890
    %v1999 = vpop.f32.mrb[0].mxu0
    %v2000 = vadd.f32 0.0, %v1999
    %v2001 = vpop.f32.mrb[0].mxu0
    %v2002 = vadd.f32 0.0, %v2001
    %2003 = vdwg.mxu0
    %2004 = vmatprep.subr.mxu0 %v1582
    %2005 = vmatpush1.msra.mxu0 %v1581
    %2006 = vmatprep.subr.mxu0 %v1590
    %2007 = vmatpush1.msra.mxu0 %v1589
    %2008 = vmatprep.subr.mxu0 %v1598
    %2009 = vmatpush1.msra.mxu0 %v1597
    %2010 = vmatprep.subr.mxu0 %v1606
    %2011 = vmatpush1.msra.mxu0 %v1605
    %2012 = vmatprep.subr.mxu0 %v1614
    %2013 = vmatpush1.msra.mxu0 %v1613
    %2014 = vmatprep.subr.mxu0 %v1622
    %2015 = vmatpush1.msra.mxu0 %v1621
    %2016 = vmatprep.subr.mxu0 %v1630
    %2017 = vmatpush1.msra.mxu0 %v1629
    %2018 = vmatprep.subr.mxu0 %v1638
    %2019 = vmatpush1.msra.mxu0 %v1637
    %2020 = vmatprep.subr.mxu0 %v1646
    %2021 = vmatpush1.msra.mxu0 %v1645
    %2022 = vmatprep.subr.mxu0 %v1654
    %2023 = vmatpush1.msra.mxu0 %v1653
    %2024 = vmatprep.subr.mxu0 %v1662
    %2025 = vmatpush1.msra.mxu0 %v1661
    %2026 = vmatprep.subr.mxu0 %v1670
    %2027 = vmatpush1.msra.mxu0 %v1669
    %2028 = vmatprep.subr.mxu0 %v1678
    %2029 = vmatpush1.msra.mxu0 %v1677
    %2030 = vmatprep.subr.mxu0 %v1686
    %2031 = vmatpush1.msra.mxu0 %v1685
    %2032 = vmatprep.subr.mxu0 %v1694
    %2033 = vmatpush1.msra.mxu0 %v1693
    %2034 = vmatprep.subr.mxu0 %v1702
    %2035 = vmatpush1.msra.mxu0 %v1701
    %2036 = vmatprep.subr.mxu0 %v1710
    %2037 = vmatpush1.msra.mxu0 %v1709
    %2038 = vmatprep.subr.mxu0 %v1718
    %2039 = vmatpush1.msra.mxu0 %v1717
    %2040 = vmatprep.subr.mxu0 %v1726
    %2041 = vmatpush1.msra.mxu0 %v1725
    %2042 = vmatprep.subr.mxu0 %v1734
    %2043 = vmatpush1.msra.mxu0 %v1733
    %2044 = vmatprep.subr.mxu0 %v1742
    %2045 = vmatpush1.msra.mxu0 %v1741
    %2046 = vmatprep.subr.mxu0 %v1750
    %2047 = vmatpush1.msra.mxu0 %v1749
    %2048 = vmatprep.subr.mxu0 %v1758
    %2049 = vmatpush1.msra.mxu0 %v1757
    %2050 = vmatprep.subr.mxu0 %v1766
    %2051 = vmatpush1.msra.mxu0 %v1765
    %2052 = vmatprep.subr.mxu0 0.0
    %2053 = vmatpush1.msra.mxu0 0.0
    %2054 = vmatprep.subr.mxu0 0.0
    %2055 = vmatpush1.msra.mxu0 0.0
    %2056 = vmatprep.subr.mxu0 0.0
    %2057 = vmatpush1.msra.mxu0 0.0
    %2058 = vmatprep.subr.mxu0 0.0
    %2059 = vmatpush1.msra.mxu0 0.0
    %2060 = vmatprep.subr.mxu0 0.0
    %2061 = vmatpush1.msra.mxu0 0.0
    %2062 = vmatprep.subr.mxu0 0.0
    %2063 = vmatpush1.msra.mxu0 0.0
    %2064 = vmatprep.subr.mxu0 0.0
    %2065 = vmatpush1.msra.mxu0 0.0
    %2066 = vmatprep.subr.mxu0 0.0
    %2067 = vmatpush1.msra.mxu0 0.0
    %2068 = vmatprep.mubr.f32.mxu0 %v1768
    %2069 = vmatmul.mubr.f32.gmra.mrb[0].mxu0 %v886
    %v2070 = vpop.f32.mrb[0].mxu0
    %v2071 = vadd.f32 0.0, %v2070
    %v2072 = vpop.f32.mrb[0].mxu0
    %v2073 = vadd.f32 0.0, %v2072
    %2074 = vmatprep.mubr.f32.mxu0 %v1771
    %2075 = vmatmul.mubr.f32.gmra.mrb[0].mxu0 %v890
    %v2076 = vpop.f32.mrb[0].mxu0
    %v2077 = vadd.f32 0.0, %v2076
    %v2078 = vpop.f32.mrb[0].mxu0
    %v2079 = vadd.f32 0.0, %v2078
    %2080 = vdwg.mxu0
    %v2081 = vld [vmem:[#allocation5] sm:$0xff]
    %v2082 = vld [vmem:[#allocation5 + $0x8] sm:$0xff]
    %v2083 = vld [vmem:[#allocation5 + $0x10] sm:$0xff]
    %v2084 = vld [vmem:[#allocation5 + $0x18] sm:$0xff]
    %v2085 = vld [vmem:[#allocation5 + $0x20] sm:$0xff]
    %v2086 = vld [vmem:[#allocation5 + $0x28] sm:$0xff]
    %v2087 = vld [vmem:[#allocation5 + $0x30] sm:$0xff]
    %v2088 = vld [vmem:[#allocation5 + $0x38] sm:$0xff]
    %v2089 = vld [vmem:[#allocation5 + $0x40] sm:$0xff]
    %v2090 = vld [vmem:[#allocation5 + $0x48] sm:$0xff]
    %v2091 = vld [vmem:[#allocation5 + $0x50] sm:$0xff]
    %v2092 = vld [vmem:[#allocation5 + $0x58] sm:$0xff]
    %v2093 = vld [vmem:[#allocation5 + $0x60] sm:$0xff]
    %v2094 = vld [vmem:[#allocation5 + $0x68] sm:$0xff]
    %v2095 = vld [vmem:[#allocation5 + $0x70] sm:$0xff]
    %v2096 = vld [vmem:[#allocation5 + $0x78] sm:$0xff]
    %v2097 = vld [vmem:[#allocation5 + $0x80] sm:$0xff]
    %v2098 = vld [vmem:[#allocation5 + $0x88] sm:$0xff]
    %v2099 = vld [vmem:[#allocation5 + $0x90] sm:$0xff]
    %v2100 = vld [vmem:[#allocation5 + $0x98] sm:$0xff]
    %v2101 = vld [vmem:[#allocation5 + $0xa0] sm:$0xff]
    %v2102 = vld [vmem:[#allocation5 + $0xa8] sm:$0xff]
    %v2103 = vld [vmem:[#allocation5 + $0xb0] sm:$0xff]
    %v2104 = vld [vmem:[#allocation5 + $0xb8] sm:$0xff]
    %v2105 = vld [vmem:[#allocation5 + $0xc0] sm:$0xff]
    %v2106 = vld [vmem:[#allocation5 + $0xc8] sm:$0xff]
    %v2107 = vld [vmem:[#allocation5 + $0xd0] sm:$0xff]
    %v2108 = vld [vmem:[#allocation5 + $0xd8] sm:$0xff]
    %v2109 = vld [vmem:[#allocation5 + $0xe0] sm:$0xff]
    %v2110 = vld [vmem:[#allocation5 + $0xe8] sm:$0xff]
    %v2111 = vld [vmem:[#allocation5 + $0xf0] sm:$0xff]
    %v2112 = vld [vmem:[#allocation5 + $0xf8] sm:$0xff]
    %v2113 = vld [vmem:[%s6] sm:$0xff]
    %v2115 = vlaneseq
    %v2116 = vshrl.u32 %v2115, 7
    %v2117 = vsub.s32 0, %v2116
    %v2118 = vrot.slane %v2113, %v2117
    %v2119 = vlaneseq
    %v2120 = vshrl.u32 %v2119, 7
    %v2121 = vsub.s32 1, %v2120
    %v2122 = vrot.slane %v2113, %v2121
    %v2123 = vlaneseq
    %v2124 = vshrl.u32 %v2123, 7
    %v2125 = vsub.s32 2, %v2124
    %v2126 = vrot.slane %v2113, %v2125
    %v2127 = vlaneseq
    %v2128 = vshrl.u32 %v2127, 7
    %v2129 = vsub.s32 3, %v2128
    %v2130 = vrot.slane %v2113, %v2129
    %v2131 = vlaneseq
    %v2132 = vshrl.u32 %v2131, 7
    %v2133 = vsub.s32 4, %v2132
    %v2134 = vrot.slane %v2113, %v2133
    %v2135 = vlaneseq
    %v2136 = vshrl.u32 %v2135, 7
    %v2137 = vsub.s32 5, %v2136
    %v2138 = vrot.slane %v2113, %v2137
    %v2139 = vlaneseq
    %v2140 = vshrl.u32 %v2139, 7
    %v2141 = vsub.s32 6, %v2140
    %v2142 = vrot.slane %v2113, %v2141
    %v2143 = vlaneseq
    %v2144 = vshrl.u32 %v2143, 7
    %v2145 = vsub.s32 7, %v2144
    %v2146 = vrot.slane %v2113, %v2145
    %v2156 = vsel %vm141, %v65, 0
    %v2159 = vsel %vm141, %v66, 0
    %2161 = vmatprep.subr.mxu0 %v2082
    %2162 = vmatpush1.msra.mxu0 %v2081
    %2163 = vmatprep.subr.mxu0 %v2090
    %2164 = vmatpush1.msra.mxu0 %v2089
    %2165 = vmatprep.subr.mxu0 %v2098
    %2166 = vmatpush1.msra.mxu0 %v2097
    %2167 = vmatprep.subr.mxu0 %v2106
    %2168 = vmatpush1.msra.mxu0 %v2105
    %2169 = vmatprep.subr.mxu0 0.0
    %2170 = vmatpush1.msra.mxu0 0.0
    %2171 = vmatprep.subr.mxu0 0.0
    %2172 = vmatpush1.msra.mxu0 0.0
    %2173 = vmatprep.subr.mxu0 0.0
    %2174 = vmatpush1.msra.mxu0 0.0
    %2175 = vmatprep.subr.mxu0 0.0
    %2176 = vmatpush1.msra.mxu0 0.0
    %2177 = vmatprep.subr.mxu0 0.0
    %2178 = vmatpush1.msra.mxu0 0.0
    %2179 = vmatprep.subr.mxu0 0.0
    %2180 = vmatpush1.msra.mxu0 0.0
    %2181 = vmatprep.subr.mxu0 0.0
    %2182 = vmatpush1.msra.mxu0 0.0
    %2183 = vmatprep.subr.mxu0 0.0
    %2184 = vmatpush1.msra.mxu0 0.0
    %2185 = vmatprep.subr.mxu0 0.0
    %2186 = vmatpush1.msra.mxu0 0.0
    %2187 = vmatprep.subr.mxu0 0.0
    %2188 = vmatpush1.msra.mxu0 0.0
    %2189 = vmatprep.subr.mxu0 0.0
    %2190 = vmatpush1.msra.mxu0 0.0
    %2191 = vmatprep.subr.mxu0 0.0
    %2192 = vmatpush1.msra.mxu0 0.0
    %2193 = vmatprep.subr.mxu0 0.0
    %2194 = vmatpush1.msra.mxu0 0.0
    %2195 = vmatprep.subr.mxu0 0.0
    %2196 = vmatpush1.msra.mxu0 0.0
    %2197 = vmatprep.subr.mxu0 0.0
    %2198 = vmatpush1.msra.mxu0 0.0
    %2199 = vmatprep.subr.mxu0 0.0
    %2200 = vmatpush1.msra.mxu0 0.0
    %2201 = vmatprep.subr.mxu0 0.0
    %2202 = vmatpush1.msra.mxu0 0.0
    %2203 = vmatprep.subr.mxu0 0.0
    %2204 = vmatpush1.msra.mxu0 0.0
    %2205 = vmatprep.subr.mxu0 0.0
    %2206 = vmatpush1.msra.mxu0 0.0
    %2207 = vmatprep.subr.mxu0 0.0
    %2208 = vmatpush1.msra.mxu0 0.0
    %2209 = vmatprep.subr.mxu0 0.0
    %2210 = vmatpush1.msra.mxu0 0.0
    %2211 = vmatprep.subr.mxu0 0.0
    %2212 = vmatpush1.msra.mxu0 0.0
    %2213 = vmatprep.subr.mxu0 0.0
    %2214 = vmatpush1.msra.mxu0 0.0
    %2215 = vmatprep.subr.mxu0 0.0
    %2216 = vmatpush1.msra.mxu0 0.0
    %2217 = vmatprep.subr.mxu0 0.0
    %2218 = vmatpush1.msra.mxu0 0.0
    %2219 = vmatprep.subr.mxu0 0.0
    %2220 = vmatpush1.msra.mxu0 0.0
    %2221 = vmatprep.subr.mxu0 0.0
    %2222 = vmatpush1.msra.mxu0 0.0
    %2223 = vmatprep.subr.mxu0 0.0
    %2224 = vmatpush1.msra.mxu0 0.0
    %2225 = vmatprep.mubr.f32.mxu0 0.0
    %2226 = vmatmul.mubr.f32.gmra.mrb[0].mxu0 %v2156
    %v2227 = vpop.f32.mrb[0].mxu0
    %v2228 = vadd.f32 %v2118, %v2227
    %v2229 = vpop.f32.mrb[0].mxu0
    %v2230 = vadd.f32 %v2122, %v2229
    %2231 = vmatprep.mubr.f32.mxu0 0.0
    %2232 = vmatmul.mubr.f32.gmra.mrb[0].mxu0 %v2159
    %v2233 = vpop.f32.mrb[0].mxu0
    %v2234 = vadd.f32 %v2118, %v2233
    %v2235 = vpop.f32.mrb[0].mxu0
    %v2236 = vadd.f32 %v2122, %v2235
    %2237 = vdwg.mxu0
    %2238 = vmatprep.subr.mxu0 %v2084
    %2239 = vmatpush1.msra.mxu0 %v2083
    %2240 = vmatprep.subr.mxu0 %v2092
    %2241 = vmatpush1.msra.mxu0 %v2091
    %2242 = vmatprep.subr.mxu0 %v2100
    %2243 = vmatpush1.msra.mxu0 %v2099
    %2244 = vmatprep.subr.mxu0 %v2108
    %2245 = vmatpush1.msra.mxu0 %v2107
    %2246 = vmatprep.subr.mxu0 0.0
    %2247 = vmatpush1.msra.mxu0 0.0
    %2248 = vmatprep.subr.mxu0 0.0
    %2249 = vmatpush1.msra.mxu0 0.0
    %2250 = vmatprep.subr.mxu0 0.0
    %2251 = vmatpush1.msra.mxu0 0.0
    %2252 = vmatprep.subr.mxu0 0.0
    %2253 = vmatpush1.msra.mxu0 0.0
    %2254 = vmatprep.subr.mxu0 0.0
    %2255 = vmatpush1.msra.mxu0 0.0
    %2256 = vmatprep.subr.mxu0 0.0
    %2257 = vmatpush1.msra.mxu0 0.0
    %2258 = vmatprep.subr.mxu0 0.0
    %2259 = vmatpush1.msra.mxu0 0.0
    %2260 = vmatprep.subr.mxu0 0.0
    %2261 = vmatpush1.msra.mxu0 0.0
    %2262 = vmatprep.subr.mxu0 0.0
    %2263 = vmatpush1.msra.mxu0 0.0
    %2264 = vmatprep.subr.mxu0 0.0
    %2265 = vmatpush1.msra.mxu0 0.0
    %2266 = vmatprep.subr.mxu0 0.0
    %2267 = vmatpush1.msra.mxu0 0.0
    %2268 = vmatprep.subr.mxu0 0.0
    %2269 = vmatpush1.msra.mxu0 0.0
    %2270 = vmatprep.subr.mxu0 0.0
    %2271 = vmatpush1.msra.mxu0 0.0
    %2272 = vmatprep.subr.mxu0 0.0
    %2273 = vmatpush1.msra.mxu0 0.0
    %2274 = vmatprep.subr.mxu0 0.0
    %2275 = vmatpush1.msra.mxu0 0.0
    %2276 = vmatprep.subr.mxu0 0.0
    %2277 = vmatpush1.msra.mxu0 0.0
    %2278 = vmatprep.subr.mxu0 0.0
    %2279 = vmatpush1.msra.mxu0 0.0
    %2280 = vmatprep.subr.mxu0 0.0
    %2281 = vmatpush1.msra.mxu0 0.0
    %2282 = vmatprep.subr.mxu0 0.0
    %2283 = vmatpush1.msra.mxu0 0.0
    %2284 = vmatprep.subr.mxu0 0.0
    %2285 = vmatpush1.msra.mxu0 0.0
    %2286 = vmatprep.subr.mxu0 0.0
    %2287 = vmatpush1.msra.mxu0 0.0
    %2288 = vmatprep.subr.mxu0 0.0
    %2289 = vmatpush1.msra.mxu0 0.0
    %2290 = vmatprep.subr.mxu0 0.0
    %2291 = vmatpush1.msra.mxu0 0.0
    %2292 = vmatprep.subr.mxu0 0.0
    %2293 = vmatpush1.msra.mxu0 0.0
    %2294 = vmatprep.subr.mxu0 0.0
    %2295 = vmatpush1.msra.mxu0 0.0
    %2296 = vmatprep.subr.mxu0 0.0
    %2297 = vmatpush1.msra.mxu0 0.0
    %2298 = vmatprep.subr.mxu0 0.0
    %2299 = vmatpush1.msra.mxu0 0.0
    %2300 = vmatprep.subr.mxu0 0.0
    %2301 = vmatpush1.msra.mxu0 0.0
    %2302 = vmatprep.mubr.f32.mxu0 0.0
    %2303 = vmatmul.mubr.f32.gmra.mrb[0].mxu0 %v2156
    %v2304 = vpop.f32.mrb[0].mxu0
    %v2305 = vadd.f32 %v2126, %v2304
    %v2306 = vpop.f32.mrb[0].mxu0
    %v2307 = vadd.f32 %v2130, %v2306
    %2308 = vmatprep.mubr.f32.mxu0 0.0
    %2309 = vmatmul.mubr.f32.gmra.mrb[0].mxu0 %v2159
    %v2310 = vpop.f32.mrb[0].mxu0
    %v2311 = vadd.f32 %v2126, %v2310
    %v2312 = vpop.f32.mrb[0].mxu0
    %v2313 = vadd.f32 %v2130, %v2312
    %2314 = vdwg.mxu0
    %2315 = vmatprep.subr.mxu0 %v2086
    %2316 = vmatpush1.msra.mxu0 %v2085
    %2317 = vmatprep.subr.mxu0 %v2094
    %2318 = vmatpush1.msra.mxu0 %v2093
    %2319 = vmatprep.subr.mxu0 %v2102
    %2320 = vmatpush1.msra.mxu0 %v2101
    %2321 = vmatprep.subr.mxu0 %v2110
    %2322 = vmatpush1.msra.mxu0 %v2109
    %2323 = vmatprep.subr.mxu0 0.0
    %2324 = vmatpush1.msra.mxu0 0.0
    %2325 = vmatprep.subr.mxu0 0.0
    %2326 = vmatpush1.msra.mxu0 0.0
    %2327 = vmatprep.subr.mxu0 0.0
    %2328 = vmatpush1.msra.mxu0 0.0
    %2329 = vmatprep.subr.mxu0 0.0
    %2330 = vmatpush1.msra.mxu0 0.0
    %2331 = vmatprep.subr.mxu0 0.0
    %2332 = vmatpush1.msra.mxu0 0.0
    %2333 = vmatprep.subr.mxu0 0.0
    %2334 = vmatpush1.msra.mxu0 0.0
    %2335 = vmatprep.subr.mxu0 0.0
    %2336 = vmatpush1.msra.mxu0 0.0
    %2337 = vmatprep.subr.mxu0 0.0
    %2338 = vmatpush1.msra.mxu0 0.0
    %2339 = vmatprep.subr.mxu0 0.0
    %2340 = vmatpush1.msra.mxu0 0.0
    %2341 = vmatprep.subr.mxu0 0.0
    %2342 = vmatpush1.msra.mxu0 0.0
    %2343 = vmatprep.subr.mxu0 0.0
    %2344 = vmatpush1.msra.mxu0 0.0
    %2345 = vmatprep.subr.mxu0 0.0
    %2346 = vmatpush1.msra.mxu0 0.0
    %2347 = vmatprep.subr.mxu0 0.0
    %2348 = vmatpush1.msra.mxu0 0.0
    %2349 = vmatprep.subr.mxu0 0.0
    %2350 = vmatpush1.msra.mxu0 0.0
    %2351 = vmatprep.subr.mxu0 0.0
    %2352 = vmatpush1.msra.mxu0 0.0
    %2353 = vmatprep.subr.mxu0 0.0
    %2354 = vmatpush1.msra.mxu0 0.0
    %2355 = vmatprep.subr.mxu0 0.0
    %2356 = vmatpush1.msra.mxu0 0.0
    %2357 = vmatprep.subr.mxu0 0.0
    %2358 = vmatpush1.msra.mxu0 0.0
    %2359 = vmatprep.subr.mxu0 0.0
    %2360 = vmatpush1.msra.mxu0 0.0
    %2361 = vmatprep.subr.mxu0 0.0
    %2362 = vmatpush1.msra.mxu0 0.0
    %2363 = vmatprep.subr.mxu0 0.0
    %2364 = vmatpush1.msra.mxu0 0.0
    %2365 = vmatprep.subr.mxu0 0.0
    %2366 = vmatpush1.msra.mxu0 0.0
    %2367 = vmatprep.subr.mxu0 0.0
    %2368 = vmatpush1.msra.mxu0 0.0
    %2369 = vmatprep.subr.mxu0 0.0
    %2370 = vmatpush1.msra.mxu0 0.0
    %2371 = vmatprep.subr.mxu0 0.0
    %2372 = vmatpush1.msra.mxu0 0.0
    %2373 = vmatprep.subr.mxu0 0.0
    %2374 = vmatpush1.msra.mxu0 0.0
    %2375 = vmatprep.subr.mxu0 0.0
    %2376 = vmatpush1.msra.mxu0 0.0
    %2377 = vmatprep.subr.mxu0 0.0
    %2378 = vmatpush1.msra.mxu0 0.0
    %2379 = vmatprep.mubr.f32.mxu0 0.0
    %2380 = vmatmul.mubr.f32.gmra.mrb[0].mxu0 %v2156
    %v2381 = vpop.f32.mrb[0].mxu0
    %v2382 = vadd.f32 %v2134, %v2381
    %v2383 = vpop.f32.mrb[0].mxu0
    %v2384 = vadd.f32 %v2138, %v2383
    %2385 = vmatprep.mubr.f32.mxu0 0.0
    %2386 = vmatmul.mubr.f32.gmra.mrb[0].mxu0 %v2159
    %v2387 = vpop.f32.mrb[0].mxu0
    %v2388 = vadd.f32 %v2134, %v2387
    %v2389 = vpop.f32.mrb[0].mxu0
    %v2390 = vadd.f32 %v2138, %v2389
    %2391 = vdwg.mxu0
    %2392 = vmatprep.subr.mxu0 %v2088
    %2393 = vmatpush1.msra.mxu0 %v2087
    %2394 = vmatprep.subr.mxu0 %v2096
    %2395 = vmatpush1.msra.mxu0 %v2095
    %2396 = vmatprep.subr.mxu0 %v2104
    %2397 = vmatpush1.msra.mxu0 %v2103
    %2398 = vmatprep.subr.mxu0 %v2112
    %2399 = vmatpush1.msra.mxu0 %v2111
    %2400 = vmatprep.subr.mxu0 0.0
    %2401 = vmatpush1.msra.mxu0 0.0
    %2402 = vmatprep.subr.mxu0 0.0
    %2403 = vmatpush1.msra.mxu0 0.0
    %2404 = vmatprep.subr.mxu0 0.0
    %2405 = vmatpush1.msra.mxu0 0.0
    %2406 = vmatprep.subr.mxu0 0.0
    %2407 = vmatpush1.msra.mxu0 0.0
    %2408 = vmatprep.subr.mxu0 0.0
    %2409 = vmatpush1.msra.mxu0 0.0
    %2410 = vmatprep.subr.mxu0 0.0
    %2411 = vmatpush1.msra.mxu0 0.0
    %2412 = vmatprep.subr.mxu0 0.0
    %2413 = vmatpush1.msra.mxu0 0.0
    %2414 = vmatprep.subr.mxu0 0.0
    %2415 = vmatpush1.msra.mxu0 0.0
    %2416 = vmatprep.subr.mxu0 0.0
    %2417 = vmatpush1.msra.mxu0 0.0
    %2418 = vmatprep.subr.mxu0 0.0
    %2419 = vmatpush1.msra.mxu0 0.0
    %2420 = vmatprep.subr.mxu0 0.0
    %2421 = vmatpush1.msra.mxu0 0.0
    %2422 = vmatprep.subr.mxu0 0.0
    %2423 = vmatpush1.msra.mxu0 0.0
    %2424 = vmatprep.subr.mxu0 0.0
    %2425 = vmatpush1.msra.mxu0 0.0
    %2426 = vmatprep.subr.mxu0 0.0
    %2427 = vmatpush1.msra.mxu0 0.0
    %2428 = vmatprep.subr.mxu0 0.0
    %2429 = vmatpush1.msra.mxu0 0.0
    %2430 = vmatprep.subr.mxu0 0.0
    %2431 = vmatpush1.msra.mxu0 0.0
    %2432 = vmatprep.subr.mxu0 0.0
    %2433 = vmatpush1.msra.mxu0 0.0
    %2434 = vmatprep.subr.mxu0 0.0
    %2435 = vmatpush1.msra.mxu0 0.0
    %2436 = vmatprep.subr.mxu0 0.0
    %2437 = vmatpush1.msra.mxu0 0.0
    %2438 = vmatprep.subr.mxu0 0.0
    %2439 = vmatpush1.msra.mxu0 0.0
    %2440 = vmatprep.subr.mxu0 0.0
    %2441 = vmatpush1.msra.mxu0 0.0
    %2442 = vmatprep.subr.mxu0 0.0
    %2443 = vmatpush1.msra.mxu0 0.0
    %2444 = vmatprep.subr.mxu0 0.0
    %2445 = vmatpush1.msra.mxu0 0.0
    %2446 = vmatprep.subr.mxu0 0.0
    %2447 = vmatpush1.msra.mxu0 0.0
    %2448 = vmatprep.subr.mxu0 0.0
    %2449 = vmatpush1.msra.mxu0 0.0
    %2450 = vmatprep.subr.mxu0 0.0
    %2451 = vmatpush1.msra.mxu0 0.0
    %2452 = vmatprep.subr.mxu0 0.0
    %2453 = vmatpush1.msra.mxu0 0.0
    %2454 = vmatprep.subr.mxu0 0.0
    %2455 = vmatpush1.msra.mxu0 0.0
    %2456 = vmatprep.mubr.f32.mxu0 0.0
    %2457 = vmatmul.mubr.f32.gmra.mrb[0].mxu0 %v2156
    %v2458 = vpop.f32.mrb[0].mxu0
    %v2459 = vadd.f32 %v2142, %v2458
    %v2460 = vpop.f32.mrb[0].mxu0
    %v2461 = vadd.f32 %v2146, %v2460
    %2462 = vmatprep.mubr.f32.mxu0 0.0
    %2463 = vmatmul.mubr.f32.gmra.mrb[0].mxu0 %v2159
    %v2464 = vpop.f32.mrb[0].mxu0
    %v2465 = vadd.f32 %v2142, %v2464
    %v2466 = vpop.f32.mrb[0].mxu0
    %v2467 = vadd.f32 %v2146, %v2466
    %2468 = vdwg.mxu0
    %v2469 = vmul.f32 %v1840, %v2228
    %v2470 = vmul.f32 %v1846, %v2234
    %v2471 = vmul.f32 %v1842, %v2230
    %v2472 = vmul.f32 %v1848, %v2236
    %v2473 = vmul.f32 %v1917, %v2305
    %v2474 = vmul.f32 %v1923, %v2311
    %v2475 = vmul.f32 %v1919, %v2307
    %v2476 = vmul.f32 %v1925, %v2313
    %v2477 = vmul.f32 %v1994, %v2382
    %v2478 = vmul.f32 %v2000, %v2388
    %v2479 = vmul.f32 %v1996, %v2384
    %v2480 = vmul.f32 %v2002, %v2390
    %v2481 = vmul.f32 %v2071, %v2459
    %v2482 = vmul.f32 %v2077, %v2465
    %v2483 = vmul.f32 %v2073, %v2461
    %v2484 = vmul.f32 %v2079, %v2467
    %v2485 = vadd.f32 %v2469, %v2471
    %v2486 = vadd.f32 %v2470, %v2472
    %v2487 = vadd.f32 %v2473, %v2475
    %v2488 = vadd.f32 %v2474, %v2476
    %v2489 = vadd.f32 %v2477, %v2479
    %v2490 = vadd.f32 %v2478, %v2480
    %v2491 = vadd.f32 %v2481, %v2483
    %v2492 = vadd.f32 %v2482, %v2484
    %v2493 = vadd.f32 %v2485, %v2487
    %v2494 = vadd.f32 %v2486, %v2488
    %v2495 = vadd.f32 %v2489, %v2491
    %v2496 = vadd.f32 %v2490, %v2492
    %v2497 = vadd.f32 %v2493, %v2495
    %v2498 = vadd.f32 %v2494, %v2496
    %v2499 = vadd.f32 %v1840, %v1842
    %v2500 = vadd.f32 %v1846, %v1848
    %v2501 = vadd.f32 %v1917, %v1919
    %v2502 = vadd.f32 %v1923, %v1925
    %v2503 = vadd.f32 %v1994, %v1996
    %v2504 = vadd.f32 %v2000, %v2002
    %v2505 = vadd.f32 %v2071, %v2073
    %v2506 = vadd.f32 %v2077, %v2079
    %v2507 = vadd.f32 %v2499, %v2501
    %v2508 = vadd.f32 %v2500, %v2502
    %v2509 = vadd.f32 %v2503, %v2505
    %v2510 = vadd.f32 %v2504, %v2506
    %v2511 = vadd.f32 %v2507, %v2509
    %v2512 = vadd.f32 %v2508, %v2510
    %vm2513 = vcmp.ge.s32.totalorder %v919, 96
    %v2514 = vsel %vm2513, 1.0, 0.0
    %v2515 = vadd.f32 %v2511, %v2514
    %v2516 = vadd.f32 %v2512, %v2514
    %v2517 = vrcp.pop %v2515
    %v2518 = vrcp.pop %v2516
    %v2519 = vmul.f32 %v2497, %v2517
    %v2520 = vmul.f32 %v2498, %v2518
    %v2521 = vld [vmem:[%s7] sm:$0xff]
    %v2522 = vld [vmem:[%s7 + $0x8] sm:$0xff]
    %v2523 = vld [vmem:[%s7 + $0x10] sm:$0xff]
    %v2524 = vld [vmem:[%s7 + $0x18] sm:$0xff]
    %v2525 = vld [vmem:[%s7 + $0x20] sm:$0xff]
    %v2526 = vld [vmem:[%s7 + $0x28] sm:$0xff]
    %v2527 = vld [vmem:[%s7 + $0x30] sm:$0xff]
    %v2528 = vld [vmem:[%s7 + $0x38] sm:$0xff]
    %v2529 = vld [vmem:[%s7 + $0x40] sm:$0xff]
    %v2530 = vld [vmem:[%s7 + $0x48] sm:$0xff]
    %v2531 = vld [vmem:[%s7 + $0x50] sm:$0xff]
    %v2532 = vld [vmem:[%s7 + $0x58] sm:$0xff]
    %v2533 = vld [vmem:[%s7 + $0x60] sm:$0xff]
    %v2534 = vld [vmem:[%s7 + $0x68] sm:$0xff]
    %v2535 = vld [vmem:[%s7 + $0x70] sm:$0xff]
    %v2536 = vld [vmem:[%s7 + $0x78] sm:$0xff]
    %v2537 = vld [vmem:[%s8] sm:$0x1]
    %v2539 = vlaneseq
    %v2540 = vshrl.u32 %v2539, 7
    %v2541 = vsub.s32 0, %v2540
    %v2542 = vrot.slane %v2537, %v2541
    %2544 = vmatprep.subr.mxu0 0.0
    %2545 = vmatpush1.msra.mxu0 %v2521
    %2546 = vmatprep.subr.mxu0 0.0
    %2547 = vmatpush1.msra.mxu0 %v2522
    %2548 = vmatprep.subr.mxu0 0.0
    %2549 = vmatpush1.msra.mxu0 %v2523
    %2550 = vmatprep.subr.mxu0 0.0
    %2551 = vmatpush1.msra.mxu0 %v2524
    %2552 = vmatprep.subr.mxu0 0.0
    %2553 = vmatpush1.msra.mxu0 %v2525
    %2554 = vmatprep.subr.mxu0 0.0
    %2555 = vmatpush1.msra.mxu0 %v2526
    %2556 = vmatprep.subr.mxu0 0.0
    %2557 = vmatpush1.msra.mxu0 %v2527
    %2558 = vmatprep.subr.mxu0 0.0
    %2559 = vmatpush1.msra.mxu0 %v2528
    %2560 = vmatprep.subr.mxu0 0.0
    %2561 = vmatpush1.msra.mxu0 %v2529
    %2562 = vmatprep.subr.mxu0 0.0
    %2563 = vmatpush1.msra.mxu0 %v2530
    %2564 = vmatprep.subr.mxu0 0.0
    %2565 = vmatpush1.msra.mxu0 %v2531
    %2566 = vmatprep.subr.mxu0 0.0
    %2567 = vmatpush1.msra.mxu0 %v2532
    %2568 = vmatprep.subr.mxu0 0.0
    %2569 = vmatpush1.msra.mxu0 %v2533
    %2570 = vmatprep.subr.mxu0 0.0
    %2571 = vmatpush1.msra.mxu0 %v2534
    %2572 = vmatprep.subr.mxu0 0.0
    %2573 = vmatpush1.msra.mxu0 %v2535
    %2574 = vmatprep.subr.mxu0 0.0
    %2575 = vmatpush1.msra.mxu0 %v2536
    %2576 = vmatprep.subr.mxu0 0.0
    %2577 = vmatpush1.msra.mxu0 0.0
    %2578 = vmatprep.subr.mxu0 0.0
    %2579 = vmatpush1.msra.mxu0 0.0
    %2580 = vmatprep.subr.mxu0 0.0
    %2581 = vmatpush1.msra.mxu0 0.0
    %2582 = vmatprep.subr.mxu0 0.0
    %2583 = vmatpush1.msra.mxu0 0.0
    %2584 = vmatprep.subr.mxu0 0.0
    %2585 = vmatpush1.msra.mxu0 0.0
    %2586 = vmatprep.subr.mxu0 0.0
    %2587 = vmatpush1.msra.mxu0 0.0
    %2588 = vmatprep.subr.mxu0 0.0
    %2589 = vmatpush1.msra.mxu0 0.0
    %2590 = vmatprep.subr.mxu0 0.0
    %2591 = vmatpush1.msra.mxu0 0.0
    %2592 = vmatprep.subr.mxu0 0.0
    %2593 = vmatpush1.msra.mxu0 0.0
    %2594 = vmatprep.subr.mxu0 0.0
    %2595 = vmatpush1.msra.mxu0 0.0
    %2596 = vmatprep.subr.mxu0 0.0
    %2597 = vmatpush1.msra.mxu0 0.0
    %2598 = vmatprep.subr.mxu0 0.0
    %2599 = vmatpush1.msra.mxu0 0.0
    %2600 = vmatprep.subr.mxu0 0.0
    %2601 = vmatpush1.msra.mxu0 0.0
    %2602 = vmatprep.subr.mxu0 0.0
    %2603 = vmatpush1.msra.mxu0 0.0
    %2604 = vmatprep.subr.mxu0 0.0
    %2605 = vmatpush1.msra.mxu0 0.0
    %2606 = vmatprep.subr.mxu0 0.0
    %2607 = vmatpush1.msra.mxu0 0.0
    %2608 = vmatprep.mubr.f32.mxu0 0.0
    %2609 = vmatmul.mubr.f32.gmra.mrb[0].mxu0 %v2519
    %v2610 = vpop.f32.mrb[0].mxu0
    %v2611 = vadd.f32 %v2542, %v2610
    %v2612 = vpop.f32.mrb[0].mxu0
    %2613 = vmatprep.mubr.f32.mxu0 0.0
    %2614 = vmatmul.mubr.f32.gmra.mrb[0].mxu0 %v2520
    %v2615 = vpop.f32.mrb[0].mxu0
    %v2616 = vadd.f32 %v2542, %v2615
    %v2617 = vpop.f32.mrb[0].mxu0
    %2618 = vdwg.mxu0
    %vm2619 = vcmask 785408
    %2620 = vst.msk [vmem:[#allocation7] sm:$0xff] %vm2619, %v2611
    %2621 = vst.msk [vmem:[#allocation7 + $0x8] sm:$0xff] %vm2619, %v2616
    // Predicated region
    $region46: #{tpu_custom_call.1} parent=1 // pred_check
      _
    $region47: #{tpu_custom_call.1} parent=1 // pred_check_branch
      %2623 = sbr.rel (0) target = $region49
    $region48: #{tpu_custom_call.1} parent=1 // pred_region
      %s2625 = ssub.s32 256, 256
      %2626 = vsyncadd [#allocation4], %s2625
      %s2627 = sshll.u32 [#allocation7], 4
      %s2628 = int_to_ptr.vmem [resolvable:$true] %s2627
      %2633 = dma.vmem_to_hbm [thread:$0]  %s2628, 256, %s9, [#allocation4], 128, 128, 8
    $region49: #{tpu_custom_call.1} parent=1 // pred_fallthru
      _
    // Predicated region
    $region50: #{tpu_custom_call.1} parent=1 // pred_check
      _
    $region51: #{tpu_custom_call.1} parent=1 // pred_check_branch
      %2635 = sbr.rel (0) target = $region53
    $region52: #{tpu_custom_call.1} parent=1 // pred_region
      %2636 = dma.done [#allocation4], 256
    $region53: #{tpu_custom_call.1} parent=1 // pred_fallthru
      _
    %2637 = vsyncpa [#allocation3], 1
    %2638 = vsyncpa [#allocation6], 1
    %2639 = vsyncpa [#allocation4], 1

</llo_original>
